<compile_context>
chip_gen: v7x
topology: tpu7x:2x2x1
jax: 0.10.0
libtpu: 0.0.40
codegen_flags: <defaults>
</compile_context>

<pallas_src>
import functools

import jax
import jax.numpy as jnp
from jax.experimental import pallas as pl
from jax.experimental.pallas import tpu as pltpu


def _layer_norm(y, gamma, beta, eps=1e-5):
    mu = jnp.mean(y, axis=-1, keepdims=True)
    var = jnp.mean((y - mu) ** 2, axis=-1, keepdims=True)
    return (y - mu) * jax.lax.rsqrt(var + eps) * gamma + beta


def encoder_layer_kernel(
    xq_ref, xkv_ref, bias_ref,
    wq_ref, bq_ref, wkv_ref, bkv_ref, wo_ref, bo_ref,
    w1_ref, b1_ref, w2_ref, b2_ref,
    g1_ref, be1_ref, g2_ref, be2_ref,
    o_ref,
    kh_ref, vh_ref,
    *, n_heads: int,
):
    f32 = jnp.float32
    bf16 = jnp.bfloat16
    H = n_heads

    S, D = xkv_ref.shape[1], xkv_ref.shape[2]
    dh = D // H

    # --- K/V projection: ONCE per batch element (first query tile), written to
    #     persistent head-major bf16 VMEM scratch. The q grid axis is
    #     "arbitrary", so every core sees q == 0 before q > 0 for its batches.
    @pl.when(pl.program_id(1) == 0)
    def _():
        xkv = xkv_ref[0]                                              # (S, D) bf16
        kv = jnp.dot(xkv, wkv_ref[...],
                     preferred_element_type=f32) + bkv_ref[...]       # (S, 2D) f32
        k = kv[:, :D]
        v = kv[:, D:]
        kh_ref[...] = k.reshape(S, H, dh).swapaxes(0, 1).astype(bf16)  # (H, S, dh)
        vh_ref[...] = v.reshape(S, H, dh).swapaxes(0, 1).astype(bf16)  # (H, S, dh)

    xq = xq_ref[0].astype(f32)                                        # (tq, D)
    tq = xq.shape[0]
    bias = bias_ref[0]                                                # (1, S) f32

    # --- Q projection (wq/bq pre-scaled by 1/sqrt(dh) in the wrapper) --------
    q = jnp.dot(xq.astype(bf16), wq_ref[...],
                preferred_element_type=f32) + bq_ref[...]             # (tq, D)
    qh = q.reshape(tq, H, dh).swapaxes(0, 1).astype(bf16)             # (H, tq, dh)

    kh = kh_ref[...]
    vh = vh_ref[...]

    # --- attention: one batched-heads contraction + additive key-mask bias ---
    scores = jnp.einsum("hqd,hkd->hqk", qh, kh,
                        preferred_element_type=f32)                   # (H, tq, S)
    scores = scores + bias[None, :, :]
    m = jnp.max(scores, axis=-1, keepdims=True)
    p = jnp.exp(scores - m)                                           # unnormalized
    l = jnp.sum(p, axis=-1, keepdims=True)                            # (H, tq, 1)
    inv_l = pl.reciprocal(l, approx=True)                             # EUP slot

    ctx = jnp.einsum("hqk,hkd->hqd", p.astype(bf16), vh,
                     preferred_element_type=f32)                      # (H, tq, dh)
    ctx = ctx * inv_l                                                 # post-PV norm
    attn = ctx.swapaxes(0, 1).reshape(tq, D)                          # merge heads
    attn = jnp.dot(attn.astype(bf16), wo_ref[...],
                   preferred_element_type=f32) + bo_ref[...]

    # --- residual + norm1 (dropout = identity in eval) ------------------------
    y = _layer_norm(xq + attn, g1_ref[...], be1_ref[...])

    # --- position-wise feed-forward -------------------------------------------
    h1 = jnp.dot(y.astype(bf16), w1_ref[...],
                 preferred_element_type=f32) + b1_ref[...]
    h1 = jnp.maximum(h1, 0.0)                                         # ReLU
    ff = jnp.dot(h1.astype(bf16), w2_ref[...],
                 preferred_element_type=f32) + b2_ref[...]

    # --- residual + norm2 ------------------------------------------------------
    out = _layer_norm(y + ff, g2_ref[...], be2_ref[...])
    o_ref[0] = out.astype(o_ref.dtype)


def _vmem_capacity_bytes():
    try:
        return int(pltpu.get_tpu_info().vmem_capacity_bytes)
    except Exception:
        return 128 * 1024 * 1024  # conservative default: v5e/v6e class


def _choose_q_tile(S, cap):
    """Return (tq, padded_S). tq is a multiple of 8 (or == S) and tq <= cap."""
    if S <= cap:
        return S, S
    for t in (cap, cap // 2):
        if S % t == 0:
            return t, S
    s_pad = ((S + cap - 1) // cap) * cap
    return cap, s_pad


def encoder_layer(x, mask, params, n_heads):
    B, S, D = x.shape
    F = params["w1"].shape[-1]
    dh = D // n_heads
    scale = 1.0 / (dh ** 0.5)

    bf16, f32 = jnp.bfloat16, jnp.float32

    # ---- generation-aware query-tile cap and VMEM budget ----------------------
    vmem_cap = _vmem_capacity_bytes()
    if vmem_cap <= 80 * 1024 * 1024:          # v7x-class: ~64 MiB per TensorCore
        tq_cap = 256
        vmem_limit = min(vmem_cap - 8 * 1024 * 1024, 56 * 1024 * 1024)
    else:                                     # v5e / v6e: 128 MiB physical
        tq_cap = 512
        vmem_limit = 96 * 1024 * 1024

    tq, s_pad = _choose_q_tile(S, tq_cap)
    n_qt = s_pad // tq

    # ---- weights: bf16 MXU operands, f32 biases; fused K/V projection --------
    wq = (params["wq"] * scale).astype(bf16)          # fold 1/sqrt(dh) into Q proj
    bq = (params["bq"] * scale).astype(f32)
    wkv = jnp.concatenate([params["wk"], params["wv"]], axis=1).astype(bf16)  # (D, 2D)
    bkv = jnp.concatenate([params["bk"], params["bv"]], axis=1).astype(f32)   # (1, 2D)
    wo = params["wo"].astype(bf16)
    bo = params["bo"].astype(f32)
    w1 = params["w1"].astype(bf16)
    b1 = params["b1"].astype(f32)
    w2 = params["w2"].astype(bf16)
    b2 = params["b2"].astype(f32)

    # precomputed additive key-mask bias (0 attend / -1e9 masked), once per call
    bias = jnp.where(mask > 0.0, 0.0, -1e9).astype(f32)      # (B, 1, S)

    xq = x                      # f32 query rows (residual path)
    xkv = x.astype(bf16)        # bf16 full sequence for K/V (halves DMA + VMEM)
    if s_pad != S:
        pad = s_pad - S
        xq = jnp.pad(xq, ((0, 0), (0, pad), (0, 0)))
        xkv = jnp.pad(xkv, ((0, 0), (0, pad), (0, 0)))
        bias = jnp.pad(bias, ((0, 0), (0, 0), (0, pad)), constant_values=-1e9)

    def const(shape):
        # constant-index operands (weights/biases/LN params): single-buffer them.
        return pl.BlockSpec(shape, lambda b, q: (0, 0),
                            pipeline_mode=pl.Buffered(1))

    in_specs = [
        pl.BlockSpec((1, tq, D), lambda b, q: (b, q, 0)),      # xq  (query tile, f32)
        pl.BlockSpec((1, s_pad, D), lambda b, q: (b, 0, 0)),   # xkv (full seq, bf16)
        pl.BlockSpec((1, 1, s_pad), lambda b, q: (b, 0, 0)),   # additive mask bias
        const((D, D)), const((1, D)),                          # wq, bq (pre-scaled)
        const((D, 2 * D)), const((1, 2 * D)),                  # wkv, bkv (fused K|V)
        const((D, D)), const((1, D)),                          # wo, bo
        const((D, F)), const((1, F)),                          # w1, b1
        const((F, D)), const((1, D)),                          # w2, b2
        const((1, D)), const((1, D)),                          # ln1 gamma, beta
        const((1, D)), const((1, D)),                          # ln2 gamma, beta
    ]

    kernel = functools.partial(encoder_layer_kernel, n_heads=n_heads)
    out = pl.pallas_call(
        kernel,
        out_shape=jax.ShapeDtypeStruct((B, s_pad, D), x.dtype),
        grid_spec=pltpu.PrefetchScalarGridSpec(
            num_scalar_prefetch=0,
            grid=(B, n_qt),
            in_specs=in_specs,
            out_specs=pl.BlockSpec((1, tq, D), lambda b, q: (b, q, 0)),
            scratch_shapes=[
                pltpu.VMEM((n_heads, s_pad, dh), bf16),   # K, head-major, persists
                pltpu.VMEM((n_heads, s_pad, dh), bf16),   # V, head-major, persists
            ],
        ),
        compiler_params=pltpu.CompilerParams(
            # q axis must be "arbitrary": K/V scratch is carried across q tiles.
            dimension_semantics=("parallel", "arbitrary"),
            vmem_limit_bytes=int(vmem_limit),
        ),
    )(
        xq, xkv, bias,
        wq, bq, wkv, bkv, wo, bo,
        w1, b1, w2, b2,
        params["g1"], params["be1"], params["g2"], params["be2"],
    )
    if s_pad != S:
        out = out[:, :S]
    return out


def encoder_layer_ref(x, mask, params, n_heads):
    """Pure-JAX f32 reference matching the PyTorch module (eval mode)."""
    B, S, D = x.shape
    dh = D // n_heads
    x = x.astype(jnp.float32)

    q = x @ params["wq"] + params["bq"]
    k = x @ params["wk"] + params["bk"]
    v = x @ params["wv"] + params["bv"]

    def split(t):  # (B,S,D) -> (B,H,S,dh)
        return t.reshape(B, S, n_heads, dh).transpose(0, 2, 1, 3)

    qh, kh, vh = split(q), split(k), split(v)
    scores = jnp.einsum("bhqd,bhkd->bhqk", qh, kh) / (dh ** 0.5)
    m = mask[:, None, :, :]  # (B,1,1,S)
    scores = jnp.where(m > 0.0, scores, -1e9)
    p = jax.nn.softmax(scores, axis=-1)
    attn = jnp.einsum("bhqk,bhkd->bhqd", p, vh).transpose(0, 2, 1, 3).reshape(B, S, D)
    attn = attn @ params["wo"] + params["bo"]

    y = _layer_norm(x + attn, params["g1"], params["be1"])
    ff = jnp.maximum(y @ params["w1"] + params["b1"], 0.0) @ params["w2"] + params["b2"]
    return _layer_norm(y + ff, params["g2"], params["be2"])


if __name__ == "__main__":
    B, S, D, H, F = 2, 8, 32, 4, 64

    key = jax.random.PRNGKey(0)
    keys = jax.random.split(key, 14)

    def w(k, shape, scale=0.05):
        return (scale * jax.random.normal(k, shape)).astype(jnp.float32)

    params = {
        "wq": w(keys[0], (D, D)), "bq": w(keys[1], (1, D)),
        "wk": w(keys[2], (D, D)), "bk": w(keys[3], (1, D)),
        "wv": w(keys[4], (D, D)), "bv": w(keys[5], (1, D)),
        "wo": w(keys[6], (D, D)), "bo": w(keys[7], (1, D)),
        "w1": w(keys[8], (D, F)), "b1": w(keys[9], (1, F)),
        "w2": w(keys[10], (F, D)), "b2": w(keys[11], (1, D)),
        "g1": jnp.ones((1, D), jnp.float32), "be1": jnp.zeros((1, D), jnp.float32),
        "g2": jnp.ones((1, D), jnp.float32), "be2": jnp.zeros((1, D), jnp.float32),
    }

    x = jax.random.normal(keys[12], (B, S, D), jnp.float32)
    # padding mask: first sample fully valid, second sample has last 3 keys masked
    lens = jnp.array([S, S - 3])
    mask = (jnp.arange(S)[None, :] < lens[:, None]).astype(jnp.float32)[:, None, :]  # (B,1,S)

    out = encoder_layer(x, mask, params, n_heads=H)
    out = jax.block_until_ready(out)

    ref = encoder_layer_ref(x, mask, params, n_heads=H)
    assert out.shape == (B, S, D)
    # bf16 MXU operands (f32 accumulate) -> compare against f32 reference with a
    # tolerance appropriate for bf16 rounding.
    max_err = float(jnp.max(jnp.abs(out - ref)))
    assert jnp.allclose(out, ref, atol=3e-2, rtol=3e-2), f"mismatch vs reference, max_err={max_err}"

    print("KERNEL_OK")
</pallas_src>

<mosaic_0001>
module attributes {stable_mosaic.version = 11 : i64} {
  func.func @encoder_layer_kernel(%arg0: i32, %arg1: i32, %arg2: memref<1x8x32xf32, #tpu.memory_space<vmem>>, %arg3: memref<1x8x32xbf16, #tpu.memory_space<vmem>>, %arg4: memref<1x1x8xf32, #tpu.memory_space<vmem>>, %arg5: memref<32x32xbf16, #tpu.memory_space<vmem>>, %arg6: memref<1x32xf32, #tpu.memory_space<vmem>>, %arg7: memref<32x64xbf16, #tpu.memory_space<vmem>>, %arg8: memref<1x64xf32, #tpu.memory_space<vmem>>, %arg9: memref<32x32xbf16, #tpu.memory_space<vmem>>, %arg10: memref<1x32xf32, #tpu.memory_space<vmem>>, %arg11: memref<32x64xbf16, #tpu.memory_space<vmem>>, %arg12: memref<1x64xf32, #tpu.memory_space<vmem>>, %arg13: memref<64x32xbf16, #tpu.memory_space<vmem>>, %arg14: memref<1x32xf32, #tpu.memory_space<vmem>>, %arg15: memref<1x32xf32, #tpu.memory_space<vmem>>, %arg16: memref<1x32xf32, #tpu.memory_space<vmem>>, %arg17: memref<1x32xf32, #tpu.memory_space<vmem>>, %arg18: memref<1x32xf32, #tpu.memory_space<vmem>>, %arg19: memref<1x8x32xf32, #tpu.memory_space<vmem>>, %arg20: memref<4x8x8xbf16, #tpu.memory_space<vmem>>, %arg21: memref<4x8x8xbf16, #tpu.memory_space<vmem>>) attributes {dimension_semantics = [#tpu.dimension_semantics<parallel>, #tpu.dimension_semantics<arbitrary>], iteration_bounds = array<i64: 2, 1>, scalar_prefetch = 0 : i64, scratch_operands = 2 : i64, tpu.core_type = #tpu.core_type<tc>, window_params = [{transform_indices = @transform_0, window_bounds = array<i64: 1, 8, 32>}, {transform_indices = @transform_1, window_bounds = array<i64: 1, 8, 32>}, {transform_indices = @transform_2, window_bounds = array<i64: 1, 1, 8>}, {pipeline_mode = #tpu.pipeline_mode<synchronous>, transform_indices = @transform_3, window_bounds = array<i64: 32, 32>}, {pipeline_mode = #tpu.pipeline_mode<synchronous>, transform_indices = @transform_4, window_bounds = array<i64: 1, 32>}, {pipeline_mode = #tpu.pipeline_mode<synchronous>, transform_indices = @transform_5, window_bounds = array<i64: 32, 64>}, {pipeline_mode = #tpu.pipeline_mode<synchronous>, transform_indices = @transform_6, window_bounds = array<i64: 1, 64>}, {pipeline_mode = #tpu.pipeline_mode<synchronous>, transform_indices = @transform_7, window_bounds = array<i64: 32, 32>}, {pipeline_mode = #tpu.pipeline_mode<synchronous>, transform_indices = @transform_8, window_bounds = array<i64: 1, 32>}, {pipeline_mode = #tpu.pipeline_mode<synchronous>, transform_indices = @transform_9, window_bounds = array<i64: 32, 64>}, {pipeline_mode = #tpu.pipeline_mode<synchronous>, transform_indices = @transform_10, window_bounds = array<i64: 1, 64>}, {pipeline_mode = #tpu.pipeline_mode<synchronous>, transform_indices = @transform_11, window_bounds = array<i64: 64, 32>}, {pipeline_mode = #tpu.pipeline_mode<synchronous>, transform_indices = @transform_12, window_bounds = array<i64: 1, 32>}, {pipeline_mode = #tpu.pipeline_mode<synchronous>, transform_indices = @transform_13, window_bounds = array<i64: 1, 32>}, {pipeline_mode = #tpu.pipeline_mode<synchronous>, transform_indices = @transform_14, window_bounds = array<i64: 1, 32>}, {pipeline_mode = #tpu.pipeline_mode<synchronous>, transform_indices = @transform_15, window_bounds = array<i64: 1, 32>}, {pipeline_mode = #tpu.pipeline_mode<synchronous>, transform_indices = @transform_16, window_bounds = array<i64: 1, 32>}, {transform_indices = @transform_17, window_bounds = array<i64: 1, 8, 32>}]} {
    %c0_i32 = arith.constant 0 : i32
    %0 = arith.cmpi eq, %arg1, %c0_i32 : i32
    %1 = arith.extui %0 : i1 to i32
    %c0_i32_0 = arith.constant 0 : i32
    %2 = arith.cmpi ne, %1, %c0_i32_0 : i32
    scf.if %2 {
      %c0_57 = arith.constant 0 : index
      %c0_58 = arith.constant 0 : index
      %c0_59 = arith.constant 0 : index
      %109 = vector.load %arg3[%c0_57, %c0_58, %c0_59] : memref<1x8x32xbf16, #tpu.memory_space<vmem>>, vector<1x8x32xbf16>
      %110 = vector.shape_cast %109 : vector<1x8x32xbf16> to vector<8x32xbf16>
      %c0_60 = arith.constant 0 : index
      %c0_61 = arith.constant 0 : index
      %111 = vector.load %arg7[%c0_60, %c0_61] : memref<32x64xbf16, #tpu.memory_space<vmem>>, vector<32x64xbf16>
      %cst_62 = arith.constant dense<0.000000e+00> : vector<8x64xf32>
      %112 = tpu.matmul %110, %111, %cst_62 {dimension_numbers = #tpu.dot_dimension_numbers<[1], [0], [0], [1], [0, 0, 1, 1], [], []>} : vector<8x32xbf16>, vector<32x64xbf16>, vector<8x64xf32> -> vector<8x64xf32>
      %c0_63 = arith.constant 0 : index
      %c0_64 = arith.constant 0 : index
      %113 = vector.load %arg8[%c0_63, %c0_64] : memref<1x64xf32, #tpu.memory_space<vmem>>, vector<1x64xf32>
      %114 = vector.broadcast %113 : vector<1x64xf32> to vector<8x64xf32>
      %115 = arith.addf %112, %114 : vector<8x64xf32>
      %116 = vector.extract_strided_slice %115 {offsets = [0, 0], sizes = [8, 32], strides = [1, 1]} : vector<8x64xf32> to vector<8x32xf32>
      %117 = vector.extract_strided_slice %115 {offsets = [0, 32], sizes = [8, 32], strides = [1, 1]} : vector<8x64xf32> to vector<8x32xf32>
      %118 = vector.shape_cast %116 : vector<8x32xf32> to vector<8x4x8xf32>
      %119 = tpu.transpose %118, [1, 0, 2] : vector<8x4x8xf32> -> vector<4x8x8xf32>
      %120 = arith.truncf %119 : vector<4x8x8xf32> to vector<4x8x8xbf16>
      %c0_65 = arith.constant 0 : index
      %c0_66 = arith.constant 0 : index
      %c0_67 = arith.constant 0 : index
      %121 = vector.load %arg20[%c0_65, %c0_66, %c0_67] : memref<4x8x8xbf16, #tpu.memory_space<vmem>>, vector<4x8x8xbf16>
      tpu.vector_store %arg20[%c0_65, %c0_66, %c0_67], %120 {strides = array<i32>} : memref<4x8x8xbf16, #tpu.memory_space<vmem>>, vector<4x8x8xbf16>,
      %122 = vector.shape_cast %117 : vector<8x32xf32> to vector<8x4x8xf32>
      %123 = tpu.transpose %122, [1, 0, 2] : vector<8x4x8xf32> -> vector<4x8x8xf32>
      %124 = arith.truncf %123 : vector<4x8x8xf32> to vector<4x8x8xbf16>
      %c0_68 = arith.constant 0 : index
      %c0_69 = arith.constant 0 : index
      %c0_70 = arith.constant 0 : index
      %125 = vector.load %arg21[%c0_68, %c0_69, %c0_70] : memref<4x8x8xbf16, #tpu.memory_space<vmem>>, vector<4x8x8xbf16>
      tpu.vector_store %arg21[%c0_68, %c0_69, %c0_70], %124 {strides = array<i32>} : memref<4x8x8xbf16, #tpu.memory_space<vmem>>, vector<4x8x8xbf16>,
    } else {
    }
    %c0 = arith.constant 0 : index
    %c0_1 = arith.constant 0 : index
    %c0_2 = arith.constant 0 : index
    %3 = vector.load %arg2[%c0, %c0_1, %c0_2] : memref<1x8x32xf32, #tpu.memory_space<vmem>>, vector<1x8x32xf32>
    %4 = vector.shape_cast %3 : vector<1x8x32xf32> to vector<8x32xf32>
    %c0_3 = arith.constant 0 : index
    %c0_4 = arith.constant 0 : index
    %c0_5 = arith.constant 0 : index
    %5 = vector.load %arg4[%c0_3, %c0_4, %c0_5] : memref<1x1x8xf32, #tpu.memory_space<vmem>>, vector<1x1x8xf32>
    %6 = vector.shape_cast %5 : vector<1x1x8xf32> to vector<1x8xf32>
    %7 = arith.truncf %4 : vector<8x32xf32> to vector<8x32xbf16>
    %c0_6 = arith.constant 0 : index
    %c0_7 = arith.constant 0 : index
    %8 = vector.load %arg5[%c0_6, %c0_7] : memref<32x32xbf16, #tpu.memory_space<vmem>>, vector<32x32xbf16>
    %cst = arith.constant dense<0.000000e+00> : vector<8x32xf32>
    %9 = tpu.matmul %7, %8, %cst {dimension_numbers = #tpu.dot_dimension_numbers<[1], [0], [0], [1], [0, 0, 1, 1], [], []>} : vector<8x32xbf16>, vector<32x32xbf16>, vector<8x32xf32> -> vector<8x32xf32>
    %c0_8 = arith.constant 0 : index
    %c0_9 = arith.constant 0 : index
    %10 = vector.load %arg6[%c0_8, %c0_9] : memref<1x32xf32, #tpu.memory_space<vmem>>, vector<1x32xf32>
    %11 = vector.broadcast %10 : vector<1x32xf32> to vector<8x32xf32>
    %12 = arith.addf %9, %11 : vector<8x32xf32>
    %13 = vector.shape_cast %12 : vector<8x32xf32> to vector<8x4x8xf32>
    %14 = tpu.transpose %13, [1, 0, 2] : vector<8x4x8xf32> -> vector<4x8x8xf32>
    %15 = arith.truncf %14 : vector<4x8x8xf32> to vector<4x8x8xbf16>
    %c0_10 = arith.constant 0 : index
    %c0_11 = arith.constant 0 : index
    %c0_12 = arith.constant 0 : index
    %16 = vector.load %arg20[%c0_10, %c0_11, %c0_12] : memref<4x8x8xbf16, #tpu.memory_space<vmem>>, vector<4x8x8xbf16>
    %c0_13 = arith.constant 0 : index
    %c0_14 = arith.constant 0 : index
    %c0_15 = arith.constant 0 : index
    %17 = vector.load %arg21[%c0_13, %c0_14, %c0_15] : memref<4x8x8xbf16, #tpu.memory_space<vmem>>, vector<4x8x8xbf16>
    "tpu.trace_start"() <{level = 10 : i32, message = "hqd,hkd->hqk"}> : () -> ()
    %cst_16 = arith.constant dense<0.000000e+00> : vector<4x8x8xf32>
    %18 = tpu.matmul %15, %16, %cst_16 {dimension_numbers = #tpu.dot_dimension_numbers<[2], [2], [1], [1], [0, 0, 0, 1, 1, 1], [0], [0]>} : vector<4x8x8xbf16>, vector<4x8x8xbf16>, vector<4x8x8xf32> -> vector<4x8x8xf32>
    "tpu.trace_stop"() : () -> ()
    %19 = vector.shape_cast %6 : vector<1x8xf32> to vector<1x1x8xf32>
    %20 = vector.broadcast %19 : vector<1x1x8xf32> to vector<4x8x8xf32>
    %21 = arith.addf %18, %20 : vector<4x8x8xf32>
    %cst_17 = arith.constant dense<0xFF800000> : vector<4x8xf32>
    %22 = vector.multi_reduction <maximumf>, %21, %cst_17 [2] : vector<4x8x8xf32> to vector<4x8xf32>
    %23 = vector.shape_cast %22 : vector<4x8xf32> to vector<4x8x1xf32>
    %24 = vector.broadcast %23 : vector<4x8x1xf32> to vector<4x8x8xf32>
    %25 = arith.subf %21, %24 : vector<4x8x8xf32>
    %26 = math.exp %25 : vector<4x8x8xf32>
    %cst_18 = arith.constant dense<0.000000e+00> : vector<4x8xf32>
    %27 = vector.multi_reduction <add>, %26, %cst_18 [2] : vector<4x8x8xf32> to vector<4x8xf32>
    %28 = vector.shape_cast %27 : vector<4x8xf32> to vector<4x8x1xf32>
    %29 = tpu.reciprocal %28 {approx = true} : vector<4x8x1xf32> -> vector<4x8x1xf32>
    %30 = arith.truncf %26 : vector<4x8x8xf32> to vector<4x8x8xbf16>
    "tpu.trace_start"() <{level = 10 : i32, message = "hqk,hkd->hqd"}> : () -> ()
    %cst_19 = arith.constant dense<0.000000e+00> : vector<4x8x8xf32>
    %31 = tpu.matmul %30, %17, %cst_19 {dimension_numbers = #tpu.dot_dimension_numbers<[2], [1], [1], [2], [0, 0, 0, 1, 1, 2], [0], [0]>} : vector<4x8x8xbf16>, vector<4x8x8xbf16>, vector<4x8x8xf32> -> vector<4x8x8xf32>
    "tpu.trace_stop"() : () -> ()
    %32 = vector.broadcast %29 : vector<4x8x1xf32> to vector<4x8x8xf32>
    %33 = arith.mulf %31, %32 : vector<4x8x8xf32>
    %34 = tpu.transpose %33, [1, 0, 2] : vector<4x8x8xf32> -> vector<8x4x8xf32>
    %35 = vector.shape_cast %34 : vector<8x4x8xf32> to vector<8x32xf32>
    %36 = arith.truncf %35 : vector<8x32xf32> to vector<8x32xbf16>
    %c0_20 = arith.constant 0 : index
    %c0_21 = arith.constant 0 : index
    %37 = vector.load %arg9[%c0_20, %c0_21] : memref<32x32xbf16, #tpu.memory_space<vmem>>, vector<32x32xbf16>
    %cst_22 = arith.constant dense<0.000000e+00> : vector<8x32xf32>
    %38 = tpu.matmul %36, %37, %cst_22 {dimension_numbers = #tpu.dot_dimension_numbers<[1], [0], [0], [1], [0, 0, 1, 1], [], []>} : vector<8x32xbf16>, vector<32x32xbf16>, vector<8x32xf32> -> vector<8x32xf32>
    %c0_23 = arith.constant 0 : index
    %c0_24 = arith.constant 0 : index
    %39 = vector.load %arg10[%c0_23, %c0_24] : memref<1x32xf32, #tpu.memory_space<vmem>>, vector<1x32xf32>
    %40 = vector.broadcast %39 : vector<1x32xf32> to vector<8x32xf32>
    %41 = arith.addf %38, %40 : vector<8x32xf32>
    %42 = arith.addf %4, %41 : vector<8x32xf32>
    %c0_25 = arith.constant 0 : index
    %c0_26 = arith.constant 0 : index
    %43 = vector.load %arg15[%c0_25, %c0_26] : memref<1x32xf32, #tpu.memory_space<vmem>>, vector<1x32xf32>
    %c0_27 = arith.constant 0 : index
    %c0_28 = arith.constant 0 : index
    %44 = vector.load %arg16[%c0_27, %c0_28] : memref<1x32xf32, #tpu.memory_space<vmem>>, vector<1x32xf32>
    %cst_29 = arith.constant dense<0.000000e+00> : vector<8xf32>
    %45 = vector.multi_reduction <add>, %42, %cst_29 [1] : vector<8x32xf32> to vector<8xf32>
    %46 = vector.shape_cast %45 : vector<8xf32> to vector<8x1xf32>
    %cst_30 = arith.constant 3.200000e+01 : f32
    %47 = vector.broadcast %cst_30 : f32 to vector<8x1xf32>
    %48 = arith.divf %46, %47 : vector<8x1xf32>
    %49 = vector.broadcast %48 : vector<8x1xf32> to vector<8x32xf32>
    %50 = arith.subf %42, %49 : vector<8x32xf32>
    %51 = arith.mulf %50, %50 : vector<8x32xf32>
    %cst_31 = arith.constant dense<0.000000e+00> : vector<8xf32>
    %52 = vector.multi_reduction <add>, %51, %cst_31 [1] : vector<8x32xf32> to vector<8xf32>
    %53 = vector.shape_cast %52 : vector<8xf32> to vector<8x1xf32>
    %cst_32 = arith.constant 3.200000e+01 : f32
    %54 = vector.broadcast %cst_32 : f32 to vector<8x1xf32>
    %55 = arith.divf %53, %54 : vector<8x1xf32>
    %56 = vector.broadcast %48 : vector<8x1xf32> to vector<8x32xf32>
    %57 = arith.subf %42, %56 : vector<8x32xf32>
    %cst_33 = arith.constant 9.99999974E-6 : f32
    %58 = vector.broadcast %cst_33 : f32 to vector<8x1xf32>
    %59 = arith.addf %55, %58 : vector<8x1xf32>
    %60 = math.rsqrt %59 : vector<8x1xf32>
    %61 = vector.broadcast %60 : vector<8x1xf32> to vector<8x32xf32>
    %62 = arith.mulf %57, %61 : vector<8x32xf32>
    %63 = vector.broadcast %43 : vector<1x32xf32> to vector<8x32xf32>
    %64 = arith.mulf %62, %63 : vector<8x32xf32>
    %65 = vector.broadcast %44 : vector<1x32xf32> to vector<8x32xf32>
    %66 = arith.addf %64, %65 : vector<8x32xf32>
    %67 = arith.truncf %66 : vector<8x32xf32> to vector<8x32xbf16>
    %c0_34 = arith.constant 0 : index
    %c0_35 = arith.constant 0 : index
    %68 = vector.load %arg11[%c0_34, %c0_35] : memref<32x64xbf16, #tpu.memory_space<vmem>>, vector<32x64xbf16>
    %cst_36 = arith.constant dense<0.000000e+00> : vector<8x64xf32>
    %69 = tpu.matmul %67, %68, %cst_36 {dimension_numbers = #tpu.dot_dimension_numbers<[1], [0], [0], [1], [0, 0, 1, 1], [], []>} : vector<8x32xbf16>, vector<32x64xbf16>, vector<8x64xf32> -> vector<8x64xf32>
    %c0_37 = arith.constant 0 : index
    %c0_38 = arith.constant 0 : index
    %70 = vector.load %arg12[%c0_37, %c0_38] : memref<1x64xf32, #tpu.memory_space<vmem>>, vector<1x64xf32>
    %71 = vector.broadcast %70 : vector<1x64xf32> to vector<8x64xf32>
    %72 = arith.addf %69, %71 : vector<8x64xf32>
    %cst_39 = arith.constant 0.000000e+00 : f32
    %73 = vector.broadcast %cst_39 : f32 to vector<8x64xf32>
    %74 = arith.maximumf %72, %73 : vector<8x64xf32>
    %75 = arith.truncf %74 : vector<8x64xf32> to vector<8x64xbf16>
    %c0_40 = arith.constant 0 : index
    %c0_41 = arith.constant 0 : index
    %76 = vector.load %arg13[%c0_40, %c0_41] : memref<64x32xbf16, #tpu.memory_space<vmem>>, vector<64x32xbf16>
    %cst_42 = arith.constant dense<0.000000e+00> : vector<8x32xf32>
    %77 = tpu.matmul %75, %76, %cst_42 {dimension_numbers = #tpu.dot_dimension_numbers<[1], [0], [0], [1], [0, 0, 1, 1], [], []>} : vector<8x64xbf16>, vector<64x32xbf16>, vector<8x32xf32> -> vector<8x32xf32>
    %c0_43 = arith.constant 0 : index
    %c0_44 = arith.constant 0 : index
    %78 = vector.load %arg14[%c0_43, %c0_44] : memref<1x32xf32, #tpu.memory_space<vmem>>, vector<1x32xf32>
    %79 = vector.broadcast %78 : vector<1x32xf32> to vector<8x32xf32>
    %80 = arith.addf %77, %79 : vector<8x32xf32>
    %81 = arith.addf %66, %80 : vector<8x32xf32>
    %c0_45 = arith.constant 0 : index
    %c0_46 = arith.constant 0 : index
    %82 = vector.load %arg17[%c0_45, %c0_46] : memref<1x32xf32, #tpu.memory_space<vmem>>, vector<1x32xf32>
    %c0_47 = arith.constant 0 : index
    %c0_48 = arith.constant 0 : index
    %83 = vector.load %arg18[%c0_47, %c0_48] : memref<1x32xf32, #tpu.memory_space<vmem>>, vector<1x32xf32>
    %cst_49 = arith.constant dense<0.000000e+00> : vector<8xf32>
    %84 = vector.multi_reduction <add>, %81, %cst_49 [1] : vector<8x32xf32> to vector<8xf32>
    %85 = vector.shape_cast %84 : vector<8xf32> to vector<8x1xf32>
    %cst_50 = arith.constant 3.200000e+01 : f32
    %86 = vector.broadcast %cst_50 : f32 to vector<8x1xf32>
    %87 = arith.divf %85, %86 : vector<8x1xf32>
    %88 = vector.broadcast %87 : vector<8x1xf32> to vector<8x32xf32>
    %89 = arith.subf %81, %88 : vector<8x32xf32>
    %90 = arith.mulf %89, %89 : vector<8x32xf32>
    %cst_51 = arith.constant dense<0.000000e+00> : vector<8xf32>
    %91 = vector.multi_reduction <add>, %90, %cst_51 [1] : vector<8x32xf32> to vector<8xf32>
    %92 = vector.shape_cast %91 : vector<8xf32> to vector<8x1xf32>
    %cst_52 = arith.constant 3.200000e+01 : f32
    %93 = vector.broadcast %cst_52 : f32 to vector<8x1xf32>
    %94 = arith.divf %92, %93 : vector<8x1xf32>
    %95 = vector.broadcast %87 : vector<8x1xf32> to vector<8x32xf32>
    %96 = arith.subf %81, %95 : vector<8x32xf32>
    %cst_53 = arith.constant 9.99999974E-6 : f32
    %97 = vector.broadcast %cst_53 : f32 to vector<8x1xf32>
    %98 = arith.addf %94, %97 : vector<8x1xf32>
    %99 = math.rsqrt %98 : vector<8x1xf32>
    %100 = vector.broadcast %99 : vector<8x1xf32> to vector<8x32xf32>
    %101 = arith.mulf %96, %100 : vector<8x32xf32>
    %102 = vector.broadcast %82 : vector<1x32xf32> to vector<8x32xf32>
    %103 = arith.mulf %101, %102 : vector<8x32xf32>
    %104 = vector.broadcast %83 : vector<1x32xf32> to vector<8x32xf32>
    %105 = arith.addf %103, %104 : vector<8x32xf32>
    %c0_54 = arith.constant 0 : index
    %c0_55 = arith.constant 0 : index
    %c0_56 = arith.constant 0 : index
    %106 = vector.load %arg19[%c0_54, %c0_55, %c0_56] : memref<1x8x32xf32, #tpu.memory_space<vmem>>, vector<1x8x32xf32>
    %107 = vector.shape_cast %106 : vector<1x8x32xf32> to vector<8x32xf32>
    %108 = vector.shape_cast %105 : vector<8x32xf32> to vector<1x8x32xf32>
    tpu.vector_store %arg19[%c0_54, %c0_55, %c0_56], %108 {strides = array<i32>} : memref<1x8x32xf32, #tpu.memory_space<vmem>>, vector<1x8x32xf32>,
    return
  }
  func.func @transform_0(%arg0: i32, %arg1: i32) -> (i32, i32, i32) {
    %c0_i32 = arith.constant 0 : i32
    %c0_i32_0 = arith.constant 0 : i32
    return %arg0, %arg1, %c0_i32 : i32, i32, i32
  }
  func.func @transform_1(%arg0: i32, %arg1: i32) -> (i32, i32, i32) {
    %c0_i32 = arith.constant 0 : i32
    %c0_i32_0 = arith.constant 0 : i32
    %c0_i32_1 = arith.constant 0 : i32
    return %arg0, %c0_i32, %c0_i32_0 : i32, i32, i32
  }
  func.func @transform_2(%arg0: i32, %arg1: i32) -> (i32, i32, i32) {
    %c0_i32 = arith.constant 0 : i32
    %c0_i32_0 = arith.constant 0 : i32
    %c0_i32_1 = arith.constant 0 : i32
    return %arg0, %c0_i32, %c0_i32_0 : i32, i32, i32
  }
  func.func @transform_3(%arg0: i32, %arg1: i32) -> (i32, i32) {
    %c0_i32 = arith.constant 0 : i32
    %c0_i32_0 = arith.constant 0 : i32
    %c0_i32_1 = arith.constant 0 : i32
    return %c0_i32, %c0_i32_0 : i32, i32
  }
  func.func @transform_4(%arg0: i32, %arg1: i32) -> (i32, i32) {
    %c0_i32 = arith.constant 0 : i32
    %c0_i32_0 = arith.constant 0 : i32
    %c0_i32_1 = arith.constant 0 : i32
    return %c0_i32, %c0_i32_0 : i32, i32
  }
  func.func @transform_5(%arg0: i32, %arg1: i32) -> (i32, i32) {
    %c0_i32 = arith.constant 0 : i32
    %c0_i32_0 = arith.constant 0 : i32
    %c0_i32_1 = arith.constant 0 : i32
    return %c0_i32, %c0_i32_0 : i32, i32
  }
  func.func @transform_6(%arg0: i32, %arg1: i32) -> (i32, i32) {
    %c0_i32 = arith.constant 0 : i32
    %c0_i32_0 = arith.constant 0 : i32
    %c0_i32_1 = arith.constant 0 : i32
    return %c0_i32, %c0_i32_0 : i32, i32
  }
  func.func @transform_7(%arg0: i32, %arg1: i32) -> (i32, i32) {
    %c0_i32 = arith.constant 0 : i32
    %c0_i32_0 = arith.constant 0 : i32
    %c0_i32_1 = arith.constant 0 : i32
    return %c0_i32, %c0_i32_0 : i32, i32
  }
  func.func @transform_8(%arg0: i32, %arg1: i32) -> (i32, i32) {
    %c0_i32 = arith.constant 0 : i32
    %c0_i32_0 = arith.constant 0 : i32
    %c0_i32_1 = arith.constant 0 : i32
    return %c0_i32, %c0_i32_0 : i32, i32
  }
  func.func @transform_9(%arg0: i32, %arg1: i32) -> (i32, i32) {
    %c0_i32 = arith.constant 0 : i32
    %c0_i32_0 = arith.constant 0 : i32
    %c0_i32_1 = arith.constant 0 : i32
    return %c0_i32, %c0_i32_0 : i32, i32
  }
  func.func @transform_10(%arg0: i32, %arg1: i32) -> (i32, i32) {
    %c0_i32 = arith.constant 0 : i32
    %c0_i32_0 = arith.constant 0 : i32
    %c0_i32_1 = arith.constant 0 : i32
    return %c0_i32, %c0_i32_0 : i32, i32
  }
  func.func @transform_11(%arg0: i32, %arg1: i32) -> (i32, i32) {
    %c0_i32 = arith.constant 0 : i32
    %c0_i32_0 = arith.constant 0 : i32
    %c0_i32_1 = arith.constant 0 : i32
    return %c0_i32, %c0_i32_0 : i32, i32
  }
  func.func @transform_12(%arg0: i32, %arg1: i32) -> (i32, i32) {
    %c0_i32 = arith.constant 0 : i32
    %c0_i32_0 = arith.constant 0 : i32
    %c0_i32_1 = arith.constant 0 : i32
    return %c0_i32, %c0_i32_0 : i32, i32
  }
  func.func @transform_13(%arg0: i32, %arg1: i32) -> (i32, i32) {
    %c0_i32 = arith.constant 0 : i32
    %c0_i32_0 = arith.constant 0 : i32
    %c0_i32_1 = arith.constant 0 : i32
    return %c0_i32, %c0_i32_0 : i32, i32
  }
  func.func @transform_14(%arg0: i32, %arg1: i32) -> (i32, i32) {
    %c0_i32 = arith.constant 0 : i32
    %c0_i32_0 = arith.constant 0 : i32
    %c0_i32_1 = arith.constant 0 : i32
    return %c0_i32, %c0_i32_0 : i32, i32
  }
  func.func @transform_15(%arg0: i32, %arg1: i32) -> (i32, i32) {
    %c0_i32 = arith.constant 0 : i32
    %c0_i32_0 = arith.constant 0 : i32
    %c0_i32_1 = arith.constant 0 : i32
    return %c0_i32, %c0_i32_0 : i32, i32
  }
  func.func @transform_16(%arg0: i32, %arg1: i32) -> (i32, i32) {
    %c0_i32 = arith.constant 0 : i32
    %c0_i32_0 = arith.constant 0 : i32
    %c0_i32_1 = arith.constant 0 : i32
    return %c0_i32, %c0_i32_0 : i32, i32
  }
  func.func @transform_17(%arg0: i32, %arg1: i32) -> (i32, i32, i32) {
    %c0_i32 = arith.constant 0 : i32
    %c0_i32_0 = arith.constant 0 : i32
    return %arg0, %arg1, %c0_i32 : i32, i32, i32
  }
}

</mosaic_0001>

<llo_original>
// kernel: tpu_custom_call.1
$region0: #{tpu_custom_call.1}
  #allocation0 [shape = 'u32[]', space=smem, size = 0x4, offset = 0x4, fixed_abs, tag = 'smem constant byte address 0x4 - core index']
  #allocation1 [shape = 'u32[144,128]{1,0:T(1,128)}', space=vmem, size = 0x12000, scoped, tag = 'internal scratch']
  #allocation2 [shape = 'bf16[4,8,8]{2,1,0:T(8,128)(2,1)}', space=vmem, size = 0x2000, scoped, tag = 'scratch operand']
  #allocation3 [shape = 'bf16[4,8,8]{2,1,0:T(8,128)(2,1)}', space=vmem, size = 0x2000, scoped, tag = 'scratch operand']
  %s0 = inlined_call_operand.hbm [shape: f32[2,8,32], index: 0, kind: input, shape index: {}]
  %s1 = inlined_call_operand.hbm [shape: bf16[2,8,32], index: 1, kind: input, shape index: {}]
  %s2 = inlined_call_operand.hbm [shape: f32[2,1,8], index: 2, kind: input, shape index: {}]
  %s3 = inlined_call_operand.hbm [shape: bf16[32,32], index: 3, kind: input, shape index: {}]
  %s4 = inlined_call_operand.hbm [shape: f32[1,32], index: 4, kind: input, shape index: {}]
  %s5 = inlined_call_operand.hbm [shape: bf16[32,64], index: 5, kind: input, shape index: {}]
  %s6 = inlined_call_operand.hbm [shape: f32[1,64], index: 6, kind: input, shape index: {}]
  %s7 = inlined_call_operand.hbm [shape: bf16[32,32], index: 7, kind: input, shape index: {}]
  %s8 = inlined_call_operand.hbm [shape: f32[1,32], index: 8, kind: input, shape index: {}]
  %s9 = inlined_call_operand.hbm [shape: bf16[32,64], index: 9, kind: input, shape index: {}]
  %s10 = inlined_call_operand.hbm [shape: f32[1,64], index: 10, kind: input, shape index: {}]
  %s11 = inlined_call_operand.hbm [shape: bf16[64,32], index: 11, kind: input, shape index: {}]
  %s12 = inlined_call_operand.hbm [shape: f32[1,32], index: 12, kind: input, shape index: {}]
  %s13 = inlined_call_operand.hbm [shape: f32[1,32], index: 13, kind: input, shape index: {}]
  %s14 = inlined_call_operand.hbm [shape: f32[1,32], index: 14, kind: input, shape index: {}]
  %s15 = inlined_call_operand.hbm [shape: f32[1,32], index: 15, kind: input, shape index: {}]
  %s16 = inlined_call_operand.hbm [shape: f32[1,32], index: 16, kind: input, shape index: {}]
  %s17 = inlined_call_operand.hbm [shape: f32[2,8,32], index: 17, kind: output, shape index: {}]
  %s18 = sld [smem:[#allocation0]]
  $region173: #{tpu_custom_call.1} parent=0
    _
  %s20 = ssub.s32 1, %s18
  %s21 = scalar_select 0, %s20, %s18
  $region1: #{tpu_custom_call.1} parent=0
    #allocation4 [shape = 'u8[8192]{0}', space=vmem, size = 0x2000, scoped, tag = 'input window, operand 0']
    #allocation5 [shape = 's32[2]{0}', space=sflag, size = 0x8, scoped, tag = 'scoped memory for tpu_custom_call.1']
    #allocation6 [shape = 's32[2]{0}', space=sflag, size = 0x8, scoped, tag = 'scoped memory for tpu_custom_call.1']
    #allocation7 [shape = 'u8[4096]{0}', space=vmem, size = 0x1000, scoped, tag = 'input window, operand 1']
    #allocation8 [shape = 's32[2]{0}', space=sflag, size = 0x8, scoped, tag = 'scoped memory for tpu_custom_call.1']
    #allocation9 [shape = 'u8[1024]{0}', space=vmem, size = 0x400, scoped, tag = 'input window, operand 2']
    #allocation10 [shape = 'u8[8192]{0}', space=vmem, size = 0x2000, scoped, tag = 'input window, operand 3, single buffered']
    #allocation11 [shape = 's32[1]{0}', space=sflag, size = 0x4, scoped, tag = 'scoped memory for tpu_custom_call.1']
    #allocation12 [shape = 'u8[512]{0}', space=vmem, size = 0x400, scoped, tag = 'input window, operand 4, single buffered']
    #allocation13 [shape = 'u8[8192]{0}', space=vmem, size = 0x2000, scoped, tag = 'input window, operand 5, single buffered']
    #allocation14 [shape = 's32[1]{0}', space=sflag, size = 0x4, scoped, tag = 'scoped memory for tpu_custom_call.1']
    #allocation15 [shape = 'u8[512]{0}', space=vmem, size = 0x400, scoped, tag = 'input window, operand 6, single buffered']
    #allocation16 [shape = 'u8[8192]{0}', space=vmem, size = 0x2000, scoped, tag = 'input window, operand 7, single buffered']
    #allocation17 [shape = 's32[1]{0}', space=sflag, size = 0x4, scoped, tag = 'scoped memory for tpu_custom_call.1']
    #allocation18 [shape = 'u8[512]{0}', space=vmem, size = 0x400, scoped, tag = 'input window, operand 8, single buffered']
    #allocation19 [shape = 'u8[8192]{0}', space=vmem, size = 0x2000, scoped, tag = 'input window, operand 9, single buffered']
    #allocation20 [shape = 's32[1]{0}', space=sflag, size = 0x4, scoped, tag = 'scoped memory for tpu_custom_call.1']
    #allocation21 [shape = 'u8[512]{0}', space=vmem, size = 0x400, scoped, tag = 'input window, operand 10, single buffered']
    #allocation22 [shape = 'u8[16384]{0}', space=vmem, size = 0x4000, scoped, tag = 'input window, operand 11, single buffered']
    #allocation23 [shape = 's32[1]{0}', space=sflag, size = 0x4, scoped, tag = 'scoped memory for tpu_custom_call.1']
    #allocation24 [shape = 'u8[512]{0}', space=vmem, size = 0x400, scoped, tag = 'input window, operand 12, single buffered']
    #allocation25 [shape = 'u8[512]{0}', space=vmem, size = 0x400, scoped, tag = 'input window, operand 13, single buffered']
    #allocation26 [shape = 's32[1]{0}', space=sflag, size = 0x4, scoped, tag = 'scoped memory for tpu_custom_call.1']
    #allocation27 [shape = 'u8[512]{0}', space=vmem, size = 0x400, scoped, tag = 'input window, operand 14, single buffered']
    #allocation28 [shape = 'u8[512]{0}', space=vmem, size = 0x400, scoped, tag = 'input window, operand 15, single buffered']
    #allocation29 [shape = 's32[1]{0}', space=sflag, size = 0x4, scoped, tag = 'scoped memory for tpu_custom_call.1']
    #allocation30 [shape = 'u8[512]{0}', space=vmem, size = 0x400, scoped, tag = 'input window, operand 16, single buffered']
    #allocation31 [shape = 'u8[8192]{0}', space=vmem, size = 0x2000, scoped, tag = 'output window, operand 0']
    %22 = vsyncpa [#allocation5], 0
    %s23 = scalar_lea.sflag [#allocation5], 1
    %24 = vsyncpa %s23, 0
    %25 = vsyncpa [#allocation8], 0
    %s26 = scalar_lea.sflag [#allocation8], 1
    %27 = vsyncpa %s26, 0
    %28 = vsyncpa [#allocation11], 0
    %29 = vsyncpa [#allocation14], 0
    %30 = vsyncpa [#allocation17], 0
    %31 = vsyncpa [#allocation20], 0
    %32 = vsyncpa [#allocation23], 0
    %33 = vsyncpa [#allocation26], 0
    %34 = vsyncpa [#allocation29], 0
    %35 = vsyncpa [#allocation6], 0
    %s36 = scalar_lea.sflag [#allocation6], 1
    %37 = vsyncpa %s36, 0
    loop: start=0, step=1, limit=4
    $region2: #{tpu_custom_call.1} parent=1 // loop_pre_header
      _
    $region3: #{tpu_custom_call.1} parent=1 // loop_header
      %s39 = sphi 0, %s43
      %p40 = scmp.ge.s32.totalorder %s39, 4
      %s46 = sphi 0, %s58
      %s47 = sphi 0, %s54
      %s48 = sphi 0, %s46
      %s49 = sphi 0, %s47
      %s50 = sphi 0, %s48
      %s51 = sphi 0, %s49
      %s63 = sphi 0, %s65
      %s66 = sphi 0, %s63
      %s67 = sphi 0, %s66
      %s83 = sphi 0, %s67
      %s89 = sphi 0, %s91
      %s92 = sphi 0, %s89
      %s93 = sphi 0, %s92
      %s109 = sphi 0, %s93
      %s115 = sphi 0, %s117
      %s118 = sphi 0, %s115
      %s119 = sphi 0, %s118
      %s135 = sphi 0, %s119
      %s139 = sphi 0, %s139
      %s141 = sphi 0, %s139
      %s142 = sphi 0, %s141
      %s156 = sphi 0, %s142
      %s160 = sphi 0, %s160
      %s162 = sphi 0, %s160
      %s163 = sphi 0, %s162
      %s177 = sphi 0, %s163
      %s181 = sphi 0, %s181
      %s183 = sphi 0, %s181
      %s184 = sphi 0, %s183
      %s198 = sphi 0, %s184
      %s202 = sphi 0, %s202
      %s204 = sphi 0, %s202
      %s205 = sphi 0, %s204
      %s219 = sphi 0, %s205
      %s223 = sphi 0, %s223
      %s225 = sphi 0, %s223
      %s226 = sphi 0, %s225
      %s240 = sphi 0, %s226
      %s244 = sphi 0, %s244
      %s246 = sphi 0, %s244
      %s247 = sphi 0, %s246
      %s261 = sphi 0, %s247
      %s265 = sphi 0, %s265
      %s267 = sphi 0, %s265
      %s268 = sphi 0, %s267
      %s282 = sphi 0, %s268
      %s286 = sphi 0, %s286
      %s288 = sphi 0, %s286
      %s289 = sphi 0, %s288
      %s303 = sphi 0, %s289
      %s307 = sphi 0, %s307
      %s309 = sphi 0, %s307
      %s310 = sphi 0, %s309
      %s324 = sphi 0, %s310
      %s328 = sphi 0, %s328
      %s330 = sphi 0, %s328
      %s331 = sphi 0, %s330
      %s345 = sphi 0, %s331
      %s349 = sphi 0, %s349
      %s351 = sphi 0, %s349
      %s352 = sphi 0, %s351
      %s366 = sphi 0, %s352
      %s370 = sphi 0, %s370
      %s372 = sphi 0, %s370
      %s373 = sphi 0, %s372
      %s387 = sphi 0, %s373
      %s391 = sphi 0, %s391
      %s393 = sphi 0, %s391
      %s394 = sphi 0, %s393
      %s408 = sphi 0, %s394
      %s412 = sphi 0, %s412
      %s414 = sphi 0, %s412
      %s415 = sphi 0, %s414
      %s429 = sphi 0, %s415
      %s437 = sphi 0, %s439
      %s440 = sphi 0, %s437
      %s441 = sphi 0, %s440
      %s457 = sphi 0, %s441
    $region4: #{tpu_custom_call.1} parent=1 // loop_header_branch
      %42 = sbr.rel (%p40) target = $region8
    $region5: #{tpu_custom_call.1} parent=1 // loop_body
      %s44 = ssub.s32 %s39, 1
      %s45 = ssub.s32 %s39, 2
      %s52 = sadd.s32 1, %s47
      %p53 = scmp.ge.s32.totalorder %s52, 1
      %s54 = scalar_select %p53, 0, %s52
      %s55 = sadd.s32 1, %s46
      %s56 = scalar_select %p53, %s55, %s46
      %p57 = scmp.ge.s32.totalorder %s56, 2
      %s58 = scalar_select %p57, 0, %s56
      %s59 = ssub.s32 %s46, %s58
      %s60 = ssub.s32 %s47, %s54
      %s61 = sor.u32 %s59, %s60
      %p62 = scmp.eq.s32.totalorder %s61, 0
      %s64 = sadd.s32 %s63, 1
      %s65 = scalar_select %p62, %s63, %s64
      %p68 = pneg %p62
      %p69 = scmp.eq.s32.totalorder %s39, 1
      %p70 = por %p68, %p69
      %p71 = scmp.ne.s32.totalorder %s63, %s66
      %p72 = scmp.eq.s32.totalorder %s39, 0
      %p73 = por %p71, %p72
      %p74 = scmp.ne.s32.totalorder %s63, %s66
      %p75 = scmp.eq.s32.totalorder %s44, 1
      %p76 = por %p74, %p75
      %p77 = scmp.ne.s32.totalorder %s66, %s67
      %p78 = scmp.eq.s32.totalorder %s44, 0
      %p79 = por %p77, %p78
      %p80 = scmp.ne.s32.totalorder %s66, %s67
      %p81 = scmp.eq.s32.totalorder %s45, 1
      %p82 = por %p80, %p81
      %p84 = scmp.ne.s32.totalorder %s67, %s83
      %p85 = scmp.eq.s32.totalorder %s45, 0
      %p86 = por %p84, %p85
      %s87 = ssub.s32 %s46, %s58
      %p88 = scmp.eq.s32.totalorder %s87, 0
      %s90 = sadd.s32 %s89, 1
      %s91 = scalar_select %p88, %s89, %s90
      %p94 = pneg %p88
      %p95 = scmp.eq.s32.totalorder %s39, 1
      %p96 = por %p94, %p95
      %p97 = scmp.ne.s32.totalorder %s89, %s92
      %p98 = scmp.eq.s32.totalorder %s39, 0
      %p99 = por %p97, %p98
      %p100 = scmp.ne.s32.totalorder %s89, %s92
      %p101 = scmp.eq.s32.totalorder %s44, 1
      %p102 = por %p100, %p101
      %p103 = scmp.ne.s32.totalorder %s92, %s93
      %p104 = scmp.eq.s32.totalorder %s44, 0
      %p105 = por %p103, %p104
      %p106 = scmp.ne.s32.totalorder %s92, %s93
      %p107 = scmp.eq.s32.totalorder %s45, 1
      %p108 = por %p106, %p107
      %p110 = scmp.ne.s32.totalorder %s93, %s109
      %p111 = scmp.eq.s32.totalorder %s45, 0
      %p112 = por %p110, %p111
      %s113 = ssub.s32 %s46, %s58
      %p114 = scmp.eq.s32.totalorder %s113, 0
      %s116 = sadd.s32 %s115, 1
      %s117 = scalar_select %p114, %s115, %s116
      %p120 = pneg %p114
      %p121 = scmp.eq.s32.totalorder %s39, 1
      %p122 = por %p120, %p121
      %p123 = scmp.ne.s32.totalorder %s115, %s118
      %p124 = scmp.eq.s32.totalorder %s39, 0
      %p125 = por %p123, %p124
      %p126 = scmp.ne.s32.totalorder %s115, %s118
      %p127 = scmp.eq.s32.totalorder %s44, 1
      %p128 = por %p126, %p127
      %p129 = scmp.ne.s32.totalorder %s118, %s119
      %p130 = scmp.eq.s32.totalorder %s44, 0
      %p131 = por %p129, %p130
      %p132 = scmp.ne.s32.totalorder %s118, %s119
      %p133 = scmp.eq.s32.totalorder %s45, 1
      %p134 = por %p132, %p133
      %p136 = scmp.ne.s32.totalorder %s119, %s135
      %p137 = scmp.eq.s32.totalorder %s45, 0
      %p138 = por %p136, %p137
      %s140 = sadd.s32 %s139, 1
      %p143 = scmp.eq.s32.totalorder %s39, 1
      %p144 = scmp.ne.s32.totalorder %s139, %s141
      %p145 = scmp.eq.s32.totalorder %s39, 0
      %p146 = por %p144, %p145
      %p147 = scmp.ne.s32.totalorder %s139, %s141
      %p148 = scmp.eq.s32.totalorder %s44, 1
      %p149 = por %p147, %p148
      %p150 = scmp.ne.s32.totalorder %s141, %s142
      %p151 = scmp.eq.s32.totalorder %s44, 0
      %p152 = por %p150, %p151
      %p153 = scmp.ne.s32.totalorder %s141, %s142
      %p154 = scmp.eq.s32.totalorder %s45, 1
      %p155 = por %p153, %p154
      %p157 = scmp.ne.s32.totalorder %s142, %s156
      %p158 = scmp.eq.s32.totalorder %s45, 0
      %p159 = por %p157, %p158
      %s161 = sadd.s32 %s160, 1
      %p164 = scmp.eq.s32.totalorder %s39, 1
      %p165 = scmp.ne.s32.totalorder %s160, %s162
      %p166 = scmp.eq.s32.totalorder %s39, 0
      %p167 = por %p165, %p166
      %p168 = scmp.ne.s32.totalorder %s160, %s162
      %p169 = scmp.eq.s32.totalorder %s44, 1
      %p170 = por %p168, %p169
      %p171 = scmp.ne.s32.totalorder %s162, %s163
      %p172 = scmp.eq.s32.totalorder %s44, 0
      %p173 = por %p171, %p172
      %p174 = scmp.ne.s32.totalorder %s162, %s163
      %p175 = scmp.eq.s32.totalorder %s45, 1
      %p176 = por %p174, %p175
      %p178 = scmp.ne.s32.totalorder %s163, %s177
      %p179 = scmp.eq.s32.totalorder %s45, 0
      %p180 = por %p178, %p179
      %s182 = sadd.s32 %s181, 1
      %p185 = scmp.eq.s32.totalorder %s39, 1
      %p186 = scmp.ne.s32.totalorder %s181, %s183
      %p187 = scmp.eq.s32.totalorder %s39, 0
      %p188 = por %p186, %p187
      %p189 = scmp.ne.s32.totalorder %s181, %s183
      %p190 = scmp.eq.s32.totalorder %s44, 1
      %p191 = por %p189, %p190
      %p192 = scmp.ne.s32.totalorder %s183, %s184
      %p193 = scmp.eq.s32.totalorder %s44, 0
      %p194 = por %p192, %p193
      %p195 = scmp.ne.s32.totalorder %s183, %s184
      %p196 = scmp.eq.s32.totalorder %s45, 1
      %p197 = por %p195, %p196
      %p199 = scmp.ne.s32.totalorder %s184, %s198
      %p200 = scmp.eq.s32.totalorder %s45, 0
      %p201 = por %p199, %p200
      %s203 = sadd.s32 %s202, 1
      %p206 = scmp.eq.s32.totalorder %s39, 1
      %p207 = scmp.ne.s32.totalorder %s202, %s204
      %p208 = scmp.eq.s32.totalorder %s39, 0
      %p209 = por %p207, %p208
      %p210 = scmp.ne.s32.totalorder %s202, %s204
      %p211 = scmp.eq.s32.totalorder %s44, 1
      %p212 = por %p210, %p211
      %p213 = scmp.ne.s32.totalorder %s204, %s205
      %p214 = scmp.eq.s32.totalorder %s44, 0
      %p215 = por %p213, %p214
      %p216 = scmp.ne.s32.totalorder %s204, %s205
      %p217 = scmp.eq.s32.totalorder %s45, 1
      %p218 = por %p216, %p217
      %p220 = scmp.ne.s32.totalorder %s205, %s219
      %p221 = scmp.eq.s32.totalorder %s45, 0
      %p222 = por %p220, %p221
      %s224 = sadd.s32 %s223, 1
      %p227 = scmp.eq.s32.totalorder %s39, 1
      %p228 = scmp.ne.s32.totalorder %s223, %s225
      %p229 = scmp.eq.s32.totalorder %s39, 0
      %p230 = por %p228, %p229
      %p231 = scmp.ne.s32.totalorder %s223, %s225
      %p232 = scmp.eq.s32.totalorder %s44, 1
      %p233 = por %p231, %p232
      %p234 = scmp.ne.s32.totalorder %s225, %s226
      %p235 = scmp.eq.s32.totalorder %s44, 0
      %p236 = por %p234, %p235
      %p237 = scmp.ne.s32.totalorder %s225, %s226
      %p238 = scmp.eq.s32.totalorder %s45, 1
      %p239 = por %p237, %p238
      %p241 = scmp.ne.s32.totalorder %s226, %s240
      %p242 = scmp.eq.s32.totalorder %s45, 0
      %p243 = por %p241, %p242
      %s245 = sadd.s32 %s244, 1
      %p248 = scmp.eq.s32.totalorder %s39, 1
      %p249 = scmp.ne.s32.totalorder %s244, %s246
      %p250 = scmp.eq.s32.totalorder %s39, 0
      %p251 = por %p249, %p250
      %p252 = scmp.ne.s32.totalorder %s244, %s246
      %p253 = scmp.eq.s32.totalorder %s44, 1
      %p254 = por %p252, %p253
      %p255 = scmp.ne.s32.totalorder %s246, %s247
      %p256 = scmp.eq.s32.totalorder %s44, 0
      %p257 = por %p255, %p256
      %p258 = scmp.ne.s32.totalorder %s246, %s247
      %p259 = scmp.eq.s32.totalorder %s45, 1
      %p260 = por %p258, %p259
      %p262 = scmp.ne.s32.totalorder %s247, %s261
      %p263 = scmp.eq.s32.totalorder %s45, 0
      %p264 = por %p262, %p263
      %s266 = sadd.s32 %s265, 1
      %p269 = scmp.eq.s32.totalorder %s39, 1
      %p270 = scmp.ne.s32.totalorder %s265, %s267
      %p271 = scmp.eq.s32.totalorder %s39, 0
      %p272 = por %p270, %p271
      %p273 = scmp.ne.s32.totalorder %s265, %s267
      %p274 = scmp.eq.s32.totalorder %s44, 1
      %p275 = por %p273, %p274
      %p276 = scmp.ne.s32.totalorder %s267, %s268
      %p277 = scmp.eq.s32.totalorder %s44, 0
      %p278 = por %p276, %p277
      %p279 = scmp.ne.s32.totalorder %s267, %s268
      %p280 = scmp.eq.s32.totalorder %s45, 1
      %p281 = por %p279, %p280
      %p283 = scmp.ne.s32.totalorder %s268, %s282
      %p284 = scmp.eq.s32.totalorder %s45, 0
      %p285 = por %p283, %p284
      %s287 = sadd.s32 %s286, 1
      %p290 = scmp.eq.s32.totalorder %s39, 1
      %p291 = scmp.ne.s32.totalorder %s286, %s288
      %p292 = scmp.eq.s32.totalorder %s39, 0
      %p293 = por %p291, %p292
      %p294 = scmp.ne.s32.totalorder %s286, %s288
      %p295 = scmp.eq.s32.totalorder %s44, 1
      %p296 = por %p294, %p295
      %p297 = scmp.ne.s32.totalorder %s288, %s289
      %p298 = scmp.eq.s32.totalorder %s44, 0
      %p299 = por %p297, %p298
      %p300 = scmp.ne.s32.totalorder %s288, %s289
      %p301 = scmp.eq.s32.totalorder %s45, 1
      %p302 = por %p300, %p301
      %p304 = scmp.ne.s32.totalorder %s289, %s303
      %p305 = scmp.eq.s32.totalorder %s45, 0
      %p306 = por %p304, %p305
      %s308 = sadd.s32 %s307, 1
      %p311 = scmp.eq.s32.totalorder %s39, 1
      %p312 = scmp.ne.s32.totalorder %s307, %s309
      %p313 = scmp.eq.s32.totalorder %s39, 0
      %p314 = por %p312, %p313
      %p315 = scmp.ne.s32.totalorder %s307, %s309
      %p316 = scmp.eq.s32.totalorder %s44, 1
      %p317 = por %p315, %p316
      %p318 = scmp.ne.s32.totalorder %s309, %s310
      %p319 = scmp.eq.s32.totalorder %s44, 0
      %p320 = por %p318, %p319
      %p321 = scmp.ne.s32.totalorder %s309, %s310
      %p322 = scmp.eq.s32.totalorder %s45, 1
      %p323 = por %p321, %p322
      %p325 = scmp.ne.s32.totalorder %s310, %s324
      %p326 = scmp.eq.s32.totalorder %s45, 0
      %p327 = por %p325, %p326
      %s329 = sadd.s32 %s328, 1
      %p332 = scmp.eq.s32.totalorder %s39, 1
      %p333 = scmp.ne.s32.totalorder %s328, %s330
      %p334 = scmp.eq.s32.totalorder %s39, 0
      %p335 = por %p333, %p334
      %p336 = scmp.ne.s32.totalorder %s328, %s330
      %p337 = scmp.eq.s32.totalorder %s44, 1
      %p338 = por %p336, %p337
      %p339 = scmp.ne.s32.totalorder %s330, %s331
      %p340 = scmp.eq.s32.totalorder %s44, 0
      %p341 = por %p339, %p340
      %p342 = scmp.ne.s32.totalorder %s330, %s331
      %p343 = scmp.eq.s32.totalorder %s45, 1
      %p344 = por %p342, %p343
      %p346 = scmp.ne.s32.totalorder %s331, %s345
      %p347 = scmp.eq.s32.totalorder %s45, 0
      %p348 = por %p346, %p347
      %s350 = sadd.s32 %s349, 1
      %p353 = scmp.eq.s32.totalorder %s39, 1
      %p354 = scmp.ne.s32.totalorder %s349, %s351
      %p355 = scmp.eq.s32.totalorder %s39, 0
      %p356 = por %p354, %p355
      %p357 = scmp.ne.s32.totalorder %s349, %s351
      %p358 = scmp.eq.s32.totalorder %s44, 1
      %p359 = por %p357, %p358
      %p360 = scmp.ne.s32.totalorder %s351, %s352
      %p361 = scmp.eq.s32.totalorder %s44, 0
      %p362 = por %p360, %p361
      %p363 = scmp.ne.s32.totalorder %s351, %s352
      %p364 = scmp.eq.s32.totalorder %s45, 1
      %p365 = por %p363, %p364
      %p367 = scmp.ne.s32.totalorder %s352, %s366
      %p368 = scmp.eq.s32.totalorder %s45, 0
      %p369 = por %p367, %p368
      %s371 = sadd.s32 %s370, 1
      %p374 = scmp.eq.s32.totalorder %s39, 1
      %p375 = scmp.ne.s32.totalorder %s370, %s372
      %p376 = scmp.eq.s32.totalorder %s39, 0
      %p377 = por %p375, %p376
      %p378 = scmp.ne.s32.totalorder %s370, %s372
      %p379 = scmp.eq.s32.totalorder %s44, 1
      %p380 = por %p378, %p379
      %p381 = scmp.ne.s32.totalorder %s372, %s373
      %p382 = scmp.eq.s32.totalorder %s44, 0
      %p383 = por %p381, %p382
      %p384 = scmp.ne.s32.totalorder %s372, %s373
      %p385 = scmp.eq.s32.totalorder %s45, 1
      %p386 = por %p384, %p385
      %p388 = scmp.ne.s32.totalorder %s373, %s387
      %p389 = scmp.eq.s32.totalorder %s45, 0
      %p390 = por %p388, %p389
      %s392 = sadd.s32 %s391, 1
      %p395 = scmp.eq.s32.totalorder %s39, 1
      %p396 = scmp.ne.s32.totalorder %s391, %s393
      %p397 = scmp.eq.s32.totalorder %s39, 0
      %p398 = por %p396, %p397
      %p399 = scmp.ne.s32.totalorder %s391, %s393
      %p400 = scmp.eq.s32.totalorder %s44, 1
      %p401 = por %p399, %p400
      %p402 = scmp.ne.s32.totalorder %s393, %s394
      %p403 = scmp.eq.s32.totalorder %s44, 0
      %p404 = por %p402, %p403
      %p405 = scmp.ne.s32.totalorder %s393, %s394
      %p406 = scmp.eq.s32.totalorder %s45, 1
      %p407 = por %p405, %p406
      %p409 = scmp.ne.s32.totalorder %s394, %s408
      %p410 = scmp.eq.s32.totalorder %s45, 0
      %p411 = por %p409, %p410
      %s413 = sadd.s32 %s412, 1
      %p416 = scmp.eq.s32.totalorder %s39, 1
      %p417 = scmp.ne.s32.totalorder %s412, %s414
      %p418 = scmp.eq.s32.totalorder %s39, 0
      %p419 = por %p417, %p418
      %p420 = scmp.ne.s32.totalorder %s412, %s414
      %p421 = scmp.eq.s32.totalorder %s44, 1
      %p422 = por %p420, %p421
      %p423 = scmp.ne.s32.totalorder %s414, %s415
      %p424 = scmp.eq.s32.totalorder %s44, 0
      %p425 = por %p423, %p424
      %p426 = scmp.ne.s32.totalorder %s414, %s415
      %p427 = scmp.eq.s32.totalorder %s45, 1
      %p428 = por %p426, %p427
      %p430 = scmp.ne.s32.totalorder %s415, %s429
      %p431 = scmp.eq.s32.totalorder %s45, 0
      %p432 = por %p430, %p431
      %s433 = ssub.s32 %s46, %s58
      %s434 = ssub.s32 %s47, %s54
      %s435 = sor.u32 %s433, %s434
      %p436 = scmp.eq.s32.totalorder %s435, 0
      %s438 = sadd.s32 %s437, 1
      %s439 = scalar_select %p436, %s437, %s438
      %p442 = pneg %p436
      %p443 = scmp.eq.s32.totalorder %s39, 1
      %p444 = por %p442, %p443
      %p445 = scmp.ne.s32.totalorder %s437, %s440
      %p446 = scmp.eq.s32.totalorder %s39, 0
      %p447 = por %p445, %p446
      %p448 = scmp.ne.s32.totalorder %s437, %s440
      %p449 = scmp.eq.s32.totalorder %s44, 1
      %p450 = por %p448, %p449
      %p451 = scmp.ne.s32.totalorder %s440, %s441
      %p452 = scmp.eq.s32.totalorder %s44, 0
      %p453 = por %p451, %p452
      %p454 = scmp.ne.s32.totalorder %s440, %s441
      %p455 = scmp.eq.s32.totalorder %s45, 1
      %p456 = por %p454, %p455
      %p458 = scmp.ne.s32.totalorder %s441, %s457
      %p459 = scmp.eq.s32.totalorder %s45, 0
      %p460 = por %p458, %p459
      %p461 = scmp.le.s32.totalorder 1, %s39
      %p462 = scmp.lt.s32.totalorder %s39, 3
      %p463 = pnand %p461, %p462
      %p464 = pneg %p463
      // Predicated region
      $region9: #{tpu_custom_call.1} parent=5 // pred_check
        _
      $region10: #{tpu_custom_call.1} parent=5 // pred_check_branch
        %466 = sbr.rel (%p463) target = $region12
      $region11: #{tpu_custom_call.1} parent=5 // pred_region
        %s467 = ssub.s32 %s39, 1
        // Predicated region
        $region13: #{tpu_custom_call.1} parent=11 // pred_check
          %p468 = pneg %p152
        $region14: #{tpu_custom_call.1} parent=11 // pred_check_branch
          %470 = sbr.rel (%p468) target = $region16
        $region15: #{tpu_custom_call.1} parent=11 // pred_region
          %s472 = ssub.s32 256, 256
          %473 = vsyncadd [#allocation11], %s472
          %s474 = sshll.u32 [#allocation10], 4
          %s475 = int_to_ptr.vmem [resolvable:$true] %s474
          %480 = dma.hbm_to_vmem [thread:$0]  %s3, 256, %s475, [#allocation11], 64, 64, 4
        $region16: #{tpu_custom_call.1} parent=11 // pred_fallthru
          _
        // Predicated region
        $region17: #{tpu_custom_call.1} parent=11 // pred_check
          %p481 = pneg %p173
        $region18: #{tpu_custom_call.1} parent=11 // pred_check_branch
          %483 = sbr.rel (%p481) target = $region20
        $region19: #{tpu_custom_call.1} parent=11 // pred_region
          %s485 = ssub.s32 16, 16
          %486 = vsyncadd [#allocation11], %s485
          %s488 = sshll.u32 [#allocation12], 4
          %s489 = int_to_ptr.vmem [resolvable:$true] %s488
          %491 = dma.hbm_to_vmem [thread:$0]  %s4, 16, %s489, [#allocation11]
        $region20: #{tpu_custom_call.1} parent=11 // pred_fallthru
          _
        // Predicated region
        $region21: #{tpu_custom_call.1} parent=11 // pred_check
          %p492 = pneg %p194
        $region22: #{tpu_custom_call.1} parent=11 // pred_check_branch
          %494 = sbr.rel (%p492) target = $region24
        $region23: #{tpu_custom_call.1} parent=11 // pred_region
          %s496 = ssub.s32 256, 256
          %497 = vsyncadd [#allocation14], %s496
          %s498 = sshll.u32 [#allocation13], 4
          %s499 = int_to_ptr.vmem [resolvable:$true] %s498
          %504 = dma.hbm_to_vmem [thread:$0]  %s5, 256, %s499, [#allocation14], 64, 64, 4
        $region24: #{tpu_custom_call.1} parent=11 // pred_fallthru
          _
        // Predicated region
        $region25: #{tpu_custom_call.1} parent=11 // pred_check
          %p505 = pneg %p215
        $region26: #{tpu_custom_call.1} parent=11 // pred_check_branch
          %507 = sbr.rel (%p505) target = $region28
        $region27: #{tpu_custom_call.1} parent=11 // pred_region
          %s509 = ssub.s32 16, 16
          %510 = vsyncadd [#allocation14], %s509
          %s512 = sshll.u32 [#allocation15], 4
          %s513 = int_to_ptr.vmem [resolvable:$true] %s512
          %515 = dma.hbm_to_vmem [thread:$0]  %s6, 16, %s513, [#allocation14]
        $region28: #{tpu_custom_call.1} parent=11 // pred_fallthru
          _
        // Predicated region
        $region29: #{tpu_custom_call.1} parent=11 // pred_check
          %p516 = pneg %p236
        $region30: #{tpu_custom_call.1} parent=11 // pred_check_branch
          %518 = sbr.rel (%p516) target = $region32
        $region31: #{tpu_custom_call.1} parent=11 // pred_region
          %s520 = ssub.s32 256, 256
          %521 = vsyncadd [#allocation17], %s520
          %s522 = sshll.u32 [#allocation16], 4
          %s523 = int_to_ptr.vmem [resolvable:$true] %s522
          %528 = dma.hbm_to_vmem [thread:$0]  %s7, 256, %s523, [#allocation17], 64, 64, 4
        $region32: #{tpu_custom_call.1} parent=11 // pred_fallthru
          _
        // Predicated region
        $region33: #{tpu_custom_call.1} parent=11 // pred_check
          %p529 = pneg %p257
        $region34: #{tpu_custom_call.1} parent=11 // pred_check_branch
          %531 = sbr.rel (%p529) target = $region36
        $region35: #{tpu_custom_call.1} parent=11 // pred_region
          %s533 = ssub.s32 16, 16
          %534 = vsyncadd [#allocation17], %s533
          %s536 = sshll.u32 [#allocation18], 4
          %s537 = int_to_ptr.vmem [resolvable:$true] %s536
          %539 = dma.hbm_to_vmem [thread:$0]  %s8, 16, %s537, [#allocation17]
        $region36: #{tpu_custom_call.1} parent=11 // pred_fallthru
          _
        // Predicated region
        $region37: #{tpu_custom_call.1} parent=11 // pred_check
          %p540 = pneg %p278
        $region38: #{tpu_custom_call.1} parent=11 // pred_check_branch
          %542 = sbr.rel (%p540) target = $region40
        $region39: #{tpu_custom_call.1} parent=11 // pred_region
          %s544 = ssub.s32 256, 256
          %545 = vsyncadd [#allocation20], %s544
          %s546 = sshll.u32 [#allocation19], 4
          %s547 = int_to_ptr.vmem [resolvable:$true] %s546
          %552 = dma.hbm_to_vmem [thread:$0]  %s9, 256, %s547, [#allocation20], 64, 64, 4
        $region40: #{tpu_custom_call.1} parent=11 // pred_fallthru
          _
        // Predicated region
        $region41: #{tpu_custom_call.1} parent=11 // pred_check
          %p553 = pneg %p299
        $region42: #{tpu_custom_call.1} parent=11 // pred_check_branch
          %555 = sbr.rel (%p553) target = $region44
        $region43: #{tpu_custom_call.1} parent=11 // pred_region
          %s557 = ssub.s32 16, 16
          %558 = vsyncadd [#allocation20], %s557
          %s560 = sshll.u32 [#allocation21], 4
          %s561 = int_to_ptr.vmem [resolvable:$true] %s560
          %563 = dma.hbm_to_vmem [thread:$0]  %s10, 16, %s561, [#allocation20]
        $region44: #{tpu_custom_call.1} parent=11 // pred_fallthru
          _
        // Predicated region
        $region45: #{tpu_custom_call.1} parent=11 // pred_check
          %p564 = pneg %p320
        $region46: #{tpu_custom_call.1} parent=11 // pred_check_branch
          %566 = sbr.rel (%p564) target = $region48
        $region47: #{tpu_custom_call.1} parent=11 // pred_region
          %s568 = ssub.s32 512, 512
          %569 = vsyncadd [#allocation23], %s568
          %s570 = sshll.u32 [#allocation22], 4
          %s571 = int_to_ptr.vmem [resolvable:$true] %s570
          %576 = dma.hbm_to_vmem [thread:$0]  %s11, 512, %s571, [#allocation23], 64, 64, 4
        $region48: #{tpu_custom_call.1} parent=11 // pred_fallthru
          _
        // Predicated region
        $region49: #{tpu_custom_call.1} parent=11 // pred_check
          %p577 = pneg %p341
        $region50: #{tpu_custom_call.1} parent=11 // pred_check_branch
          %579 = sbr.rel (%p577) target = $region52
        $region51: #{tpu_custom_call.1} parent=11 // pred_region
          %s581 = ssub.s32 16, 16
          %582 = vsyncadd [#allocation23], %s581
          %s584 = sshll.u32 [#allocation24], 4
          %s585 = int_to_ptr.vmem [resolvable:$true] %s584
          %587 = dma.hbm_to_vmem [thread:$0]  %s12, 16, %s585, [#allocation23]
        $region52: #{tpu_custom_call.1} parent=11 // pred_fallthru
          _
        // Predicated region
        $region53: #{tpu_custom_call.1} parent=11 // pred_check
          %p588 = pneg %p362
        $region54: #{tpu_custom_call.1} parent=11 // pred_check_branch
          %590 = sbr.rel (%p588) target = $region56
        $region55: #{tpu_custom_call.1} parent=11 // pred_region
          %s592 = ssub.s32 16, 16
          %593 = vsyncadd [#allocation26], %s592
          %s595 = sshll.u32 [#allocation25], 4
          %s596 = int_to_ptr.vmem [resolvable:$true] %s595
          %598 = dma.hbm_to_vmem [thread:$0]  %s13, 16, %s596, [#allocation26]
        $region56: #{tpu_custom_call.1} parent=11 // pred_fallthru
          _
        // Predicated region
        $region57: #{tpu_custom_call.1} parent=11 // pred_check
          %p599 = pneg %p383
        $region58: #{tpu_custom_call.1} parent=11 // pred_check_branch
          %601 = sbr.rel (%p599) target = $region60
        $region59: #{tpu_custom_call.1} parent=11 // pred_region
          %s603 = ssub.s32 16, 16
          %604 = vsyncadd [#allocation26], %s603
          %s606 = sshll.u32 [#allocation27], 4
          %s607 = int_to_ptr.vmem [resolvable:$true] %s606
          %609 = dma.hbm_to_vmem [thread:$0]  %s14, 16, %s607, [#allocation26]
        $region60: #{tpu_custom_call.1} parent=11 // pred_fallthru
          _
        // Predicated region
        $region61: #{tpu_custom_call.1} parent=11 // pred_check
          %p610 = pneg %p404
        $region62: #{tpu_custom_call.1} parent=11 // pred_check_branch
          %612 = sbr.rel (%p610) target = $region64
        $region63: #{tpu_custom_call.1} parent=11 // pred_region
          %s614 = ssub.s32 16, 16
          %615 = vsyncadd [#allocation29], %s614
          %s617 = sshll.u32 [#allocation28], 4
          %s618 = int_to_ptr.vmem [resolvable:$true] %s617
          %620 = dma.hbm_to_vmem [thread:$0]  %s15, 16, %s618, [#allocation29]
        $region64: #{tpu_custom_call.1} parent=11 // pred_fallthru
          _
        // Predicated region
        $region65: #{tpu_custom_call.1} parent=11 // pred_check
          %p621 = pneg %p425
        $region66: #{tpu_custom_call.1} parent=11 // pred_check_branch
          %623 = sbr.rel (%p621) target = $region68
        $region67: #{tpu_custom_call.1} parent=11 // pred_region
          %s625 = ssub.s32 16, 16
          %626 = vsyncadd [#allocation29], %s625
          %s628 = sshll.u32 [#allocation30], 4
          %s629 = int_to_ptr.vmem [resolvable:$true] %s628
          %631 = dma.hbm_to_vmem [thread:$0]  %s16, 16, %s629, [#allocation29]
        $region68: #{tpu_custom_call.1} parent=11 // pred_fallthru
          _
      $region12: #{tpu_custom_call.1} parent=5 // pred_fallthru
        _
      %p632 = scmp.lt.s32.totalorder %s39, 2
      // Predicated region
      $region69: #{tpu_custom_call.1} parent=5 // pred_check
        %p633 = pneg %p632
      $region70: #{tpu_custom_call.1} parent=5 // pred_check_branch
        %635 = sbr.rel (%p633) target = $region72
      $region71: #{tpu_custom_call.1} parent=5 // pred_region
        // Predicated region
        $region73: #{tpu_custom_call.1} parent=71 // pred_check
          %p636 = pneg %p73
        $region74: #{tpu_custom_call.1} parent=71 // pred_check_branch
          %638 = sbr.rel (%p636) target = $region76
        $region75: #{tpu_custom_call.1} parent=71 // pred_region
          %s639 = sand.u32 %s63, 1
          %s640 = scalar_lea.sflag [#allocation5], %s639
          %s641 = sand.u32 %s63, 1
          %s642 = smul.addr %s641, 8
          %s643 = scalar_lea.vmem [#allocation4], %s642
          %s645 = ssub.s32 128, 128
          %646 = vsyncadd %s640, %s645
          %s647 = sadd.s32 %s47, %s46
          %s648 = smul.addr %s647, 128
          %s649 = scalar_lea.hbm %s0, %s648
          %s651 = sshll.u32 %s643, 4
          %s652 = int_to_ptr.vmem [resolvable:$true] %s651
          %654 = dma.hbm_to_vmem [thread:$0]  %s649, 128, %s652, %s640
        $region76: #{tpu_custom_call.1} parent=71 // pred_fallthru
          _
        // Predicated region
        $region77: #{tpu_custom_call.1} parent=71 // pred_check
          %p655 = pneg %p99
        $region78: #{tpu_custom_call.1} parent=71 // pred_check_branch
          %657 = sbr.rel (%p655) target = $region80
        $region79: #{tpu_custom_call.1} parent=71 // pred_region
          %s658 = sand.u32 %s39, 1
          %s659 = scalar_lea.sflag [#allocation8], %s658
          %s660 = sand.u32 %s89, 1
          %s661 = smul.addr %s660, 4
          %s662 = scalar_lea.vmem [#allocation7], %s661
          %s664 = ssub.s32 64, 64
          %665 = vsyncadd %s659, %s664
          %s666 = smul.addr %s46, 64
          %s667 = scalar_lea.hbm %s1, %s666
          %s669 = sshll.u32 %s662, 4
          %s670 = int_to_ptr.vmem [resolvable:$true] %s669
          %672 = dma.hbm_to_vmem [thread:$0]  %s667, 64, %s670, %s659
        $region80: #{tpu_custom_call.1} parent=71 // pred_fallthru
          _
        // Predicated region
        $region81: #{tpu_custom_call.1} parent=71 // pred_check
          %p673 = pneg %p125
        $region82: #{tpu_custom_call.1} parent=71 // pred_check_branch
          %675 = sbr.rel (%p673) target = $region84
        $region83: #{tpu_custom_call.1} parent=71 // pred_region
          %s676 = sand.u32 %s39, 1
          %s677 = scalar_lea.sflag [#allocation8], %s676
          %s678 = sand.u32 %s115, 1
          %s679 = scalar_lea.vmem [#allocation9], %s678
          %s681 = ssub.s32 16, 16
          %682 = vsyncadd %s677, %s681
          %s683 = smul.addr %s46, 16
          %s684 = scalar_lea.hbm %s2, %s683
          %s686 = sshll.u32 %s679, 4
          %s687 = int_to_ptr.vmem [resolvable:$true] %s686
          %689 = dma.hbm_to_vmem [thread:$0]  %s684, 16, %s687, %s677
        $region84: #{tpu_custom_call.1} parent=71 // pred_fallthru
          _
      $region72: #{tpu_custom_call.1} parent=5 // pred_fallthru
        _
      %p690 = scmp.le.s32.totalorder 1, %s39
      %p691 = scmp.lt.s32.totalorder %s39, 3
      %p692 = pnand %p690, %p691
      %p693 = pneg %p692
      // Predicated region
      $region85: #{tpu_custom_call.1} parent=5 // pred_check
        _
      $region86: #{tpu_custom_call.1} parent=5 // pred_check_branch
        %695 = sbr.rel (%p692) target = $region88
      $region87: #{tpu_custom_call.1} parent=5 // pred_region
        %s696 = ssub.s32 %s39, 1
        %s697 = sand.u32 %s66, 1
        %s698 = scalar_lea.sflag [#allocation5], %s697
        %s699 = sand.u32 %s66, 1
        %s700 = smul.addr %s699, 8
        %s701 = scalar_lea.vmem [#allocation4], %s700
        // Predicated region
        $region89: #{tpu_custom_call.1} parent=87 // pred_check
          %p702 = pneg %p79
        $region90: #{tpu_custom_call.1} parent=87 // pred_check_branch
          %704 = sbr.rel (%p702) target = $region92
        $region91: #{tpu_custom_call.1} parent=87 // pred_region
          %705 = dma.done %s698, 128
        $region92: #{tpu_custom_call.1} parent=87 // pred_fallthru
          _
        %s706 = sand.u32 %s44, 1
        %s707 = scalar_lea.sflag [#allocation8], %s706
        %s708 = sand.u32 %s92, 1
        %s709 = smul.addr %s708, 4
        %s710 = scalar_lea.vmem [#allocation7], %s709
        // Predicated region
        $region93: #{tpu_custom_call.1} parent=87 // pred_check
          %p711 = pneg %p105
        $region94: #{tpu_custom_call.1} parent=87 // pred_check_branch
          %713 = sbr.rel (%p711) target = $region96
        $region95: #{tpu_custom_call.1} parent=87 // pred_region
          %714 = dma.done %s707, 64
        $region96: #{tpu_custom_call.1} parent=87 // pred_fallthru
          _
        %s715 = sand.u32 %s44, 1
        %s716 = scalar_lea.sflag [#allocation8], %s715
        %s717 = sand.u32 %s118, 1
        %s718 = scalar_lea.vmem [#allocation9], %s717
        // Predicated region
        $region97: #{tpu_custom_call.1} parent=87 // pred_check
          %p719 = pneg %p131
        $region98: #{tpu_custom_call.1} parent=87 // pred_check_branch
          %721 = sbr.rel (%p719) target = $region100
        $region99: #{tpu_custom_call.1} parent=87 // pred_region
          %722 = dma.done %s716, 16
        $region100: #{tpu_custom_call.1} parent=87 // pred_fallthru
          _
        // Predicated region
        $region101: #{tpu_custom_call.1} parent=87 // pred_check
          %p723 = pneg %p152
        $region102: #{tpu_custom_call.1} parent=87 // pred_check_branch
          %725 = sbr.rel (%p723) target = $region104
        $region103: #{tpu_custom_call.1} parent=87 // pred_region
          %726 = dma.done [#allocation11], 256
        $region104: #{tpu_custom_call.1} parent=87 // pred_fallthru
          _
        // Predicated region
        $region105: #{tpu_custom_call.1} parent=87 // pred_check
          %p727 = pneg %p173
        $region106: #{tpu_custom_call.1} parent=87 // pred_check_branch
          %729 = sbr.rel (%p727) target = $region108
        $region107: #{tpu_custom_call.1} parent=87 // pred_region
          %730 = dma.done [#allocation11], 16
        $region108: #{tpu_custom_call.1} parent=87 // pred_fallthru
          _
        // Predicated region
        $region109: #{tpu_custom_call.1} parent=87 // pred_check
          %p731 = pneg %p194
        $region110: #{tpu_custom_call.1} parent=87 // pred_check_branch
          %733 = sbr.rel (%p731) target = $region112
        $region111: #{tpu_custom_call.1} parent=87 // pred_region
          %734 = dma.done [#allocation14], 256
        $region112: #{tpu_custom_call.1} parent=87 // pred_fallthru
          _
        // Predicated region
        $region113: #{tpu_custom_call.1} parent=87 // pred_check
          %p735 = pneg %p215
        $region114: #{tpu_custom_call.1} parent=87 // pred_check_branch
          %737 = sbr.rel (%p735) target = $region116
        $region115: #{tpu_custom_call.1} parent=87 // pred_region
          %738 = dma.done [#allocation14], 16
        $region116: #{tpu_custom_call.1} parent=87 // pred_fallthru
          _
        // Predicated region
        $region117: #{tpu_custom_call.1} parent=87 // pred_check
          %p739 = pneg %p236
        $region118: #{tpu_custom_call.1} parent=87 // pred_check_branch
          %741 = sbr.rel (%p739) target = $region120
        $region119: #{tpu_custom_call.1} parent=87 // pred_region
          %742 = dma.done [#allocation17], 256
        $region120: #{tpu_custom_call.1} parent=87 // pred_fallthru
          _
        // Predicated region
        $region121: #{tpu_custom_call.1} parent=87 // pred_check
          %p743 = pneg %p257
        $region122: #{tpu_custom_call.1} parent=87 // pred_check_branch
          %745 = sbr.rel (%p743) target = $region124
        $region123: #{tpu_custom_call.1} parent=87 // pred_region
          %746 = dma.done [#allocation17], 16
        $region124: #{tpu_custom_call.1} parent=87 // pred_fallthru
          _
        // Predicated region
        $region125: #{tpu_custom_call.1} parent=87 // pred_check
          %p747 = pneg %p278
        $region126: #{tpu_custom_call.1} parent=87 // pred_check_branch
          %749 = sbr.rel (%p747) target = $region128
        $region127: #{tpu_custom_call.1} parent=87 // pred_region
          %750 = dma.done [#allocation20], 256
        $region128: #{tpu_custom_call.1} parent=87 // pred_fallthru
          _
        // Predicated region
        $region129: #{tpu_custom_call.1} parent=87 // pred_check
          %p751 = pneg %p299
        $region130: #{tpu_custom_call.1} parent=87 // pred_check_branch
          %753 = sbr.rel (%p751) target = $region132
        $region131: #{tpu_custom_call.1} parent=87 // pred_region
          %754 = dma.done [#allocation20], 16
        $region132: #{tpu_custom_call.1} parent=87 // pred_fallthru
          _
        // Predicated region
        $region133: #{tpu_custom_call.1} parent=87 // pred_check
          %p755 = pneg %p320
        $region134: #{tpu_custom_call.1} parent=87 // pred_check_branch
          %757 = sbr.rel (%p755) target = $region136
        $region135: #{tpu_custom_call.1} parent=87 // pred_region
          %758 = dma.done [#allocation23], 512
        $region136: #{tpu_custom_call.1} parent=87 // pred_fallthru
          _
        // Predicated region
        $region137: #{tpu_custom_call.1} parent=87 // pred_check
          %p759 = pneg %p341
        $region138: #{tpu_custom_call.1} parent=87 // pred_check_branch
          %761 = sbr.rel (%p759) target = $region140
        $region139: #{tpu_custom_call.1} parent=87 // pred_region
          %762 = dma.done [#allocation23], 16
        $region140: #{tpu_custom_call.1} parent=87 // pred_fallthru
          _
        // Predicated region
        $region141: #{tpu_custom_call.1} parent=87 // pred_check
          %p763 = pneg %p362
        $region142: #{tpu_custom_call.1} parent=87 // pred_check_branch
          %765 = sbr.rel (%p763) target = $region144
        $region143: #{tpu_custom_call.1} parent=87 // pred_region
          %766 = dma.done [#allocation26], 16
        $region144: #{tpu_custom_call.1} parent=87 // pred_fallthru
          _
        // Predicated region
        $region145: #{tpu_custom_call.1} parent=87 // pred_check
          %p767 = pneg %p383
        $region146: #{tpu_custom_call.1} parent=87 // pred_check_branch
          %769 = sbr.rel (%p767) target = $region148
        $region147: #{tpu_custom_call.1} parent=87 // pred_region
          %770 = dma.done [#allocation26], 16
        $region148: #{tpu_custom_call.1} parent=87 // pred_fallthru
          _
        // Predicated region
        $region149: #{tpu_custom_call.1} parent=87 // pred_check
          %p771 = pneg %p404
        $region150: #{tpu_custom_call.1} parent=87 // pred_check_branch
          %773 = sbr.rel (%p771) target = $region152
        $region151: #{tpu_custom_call.1} parent=87 // pred_region
          %774 = dma.done [#allocation29], 16
        $region152: #{tpu_custom_call.1} parent=87 // pred_fallthru
          _
        // Predicated region
        $region153: #{tpu_custom_call.1} parent=87 // pred_check
          %p775 = pneg %p425
        $region154: #{tpu_custom_call.1} parent=87 // pred_check_branch
          %777 = sbr.rel (%p775) target = $region156
        $region155: #{tpu_custom_call.1} parent=87 // pred_region
          %778 = dma.done [#allocation29], 16
        $region156: #{tpu_custom_call.1} parent=87 // pred_fallthru
          _
        %s779 = sand.u32 %s66, 1
        %s780 = scalar_lea.sflag [#allocation5], %s779
        %s781 = sand.u32 %s66, 1
        %s782 = smul.addr %s781, 8
        %s783 = scalar_lea.vmem [#allocation4], %s782
        %p784 = pneg %p79
        %p785 = pneg %p76
        %s786 = sand.u32 %s44, 1
        %s787 = scalar_lea.sflag [#allocation8], %s786
        %s788 = sand.u32 %s92, 1
        %s789 = smul.addr %s788, 4
        %s790 = scalar_lea.vmem [#allocation7], %s789
        %p791 = pneg %p105
        %p792 = pneg %p102
        %s793 = sand.u32 %s44, 1
        %s794 = scalar_lea.sflag [#allocation8], %s793
        %s795 = sand.u32 %s118, 1
        %s796 = scalar_lea.vmem [#allocation9], %s795
        %p797 = pneg %p131
        %p798 = pneg %p128
        %p799 = pneg %p152
        %p800 = pneg %p149
        %p801 = pneg %p173
        %p802 = pneg %p170
        %p803 = pneg %p194
        %p804 = pneg %p191
        %p805 = pneg %p215
        %p806 = pneg %p212
        %p807 = pneg %p236
        %p808 = pneg %p233
        %p809 = pneg %p257
        %p810 = pneg %p254
        %p811 = pneg %p278
        %p812 = pneg %p275
        %p813 = pneg %p299
        %p814 = pneg %p296
        %p815 = pneg %p320
        %p816 = pneg %p317
        %p817 = pneg %p341
        %p818 = pneg %p338
        %p819 = pneg %p362
        %p820 = pneg %p359
        %p821 = pneg %p383
        %p822 = pneg %p380
        %p823 = pneg %p404
        %p824 = pneg %p401
        %p825 = pneg %p425
        %p826 = pneg %p422
        %p827 = pneg %p453
        %p828 = pneg %p450
        %s829 = sand.u32 %s440, 1
        %s830 = scalar_lea.sflag [#allocation6], %s829
        %s831 = sand.u32 %s440, 1
        %s832 = smul.addr %s831, 8
        %s833 = scalar_lea.vmem [#allocation31], %s832
        %p835 = scmp.eq.s32.totalorder %s49, 0
        // Predicated region
        $region157: #{tpu_custom_call.1} parent=87 // pred_check
          %p836 = pneg %p835
        $region158: #{tpu_custom_call.1} parent=87 // pred_check_branch
          %838 = sbr.rel (%p836) target = $region160
        $region159: #{tpu_custom_call.1} parent=87 // pred_region
          %v839 = vld [vmem:[%s710] sm:$0xf]
          %v840 = vld [vmem:[#allocation13] sm:$0xf]
          %v841 = vld [vmem:[#allocation13 + $0x4] sm:$0xf]
          %v842 = vld [vmem:[#allocation13 + $0x8] sm:$0xf]
          %v843 = vld [vmem:[#allocation13 + $0xc] sm:$0xf]
          %v844 = vld [vmem:[#allocation15] sm:$0x1]
          %v846 = vlaneseq
          %v847 = vshrl.u32 %v846, 7
          %v848 = vsub.s32 0, %v847
          %v849 = vrot.slane %v844, %v848
          %v855 = vunpack.c.l.b16 %v840
          %v856 = vunpack.c.l.b16 %v841
          %v857 = vunpack.c.l.b16 %v842
          %v858 = vunpack.c.l.b16 %v843
          %v859 = vpack.c.b16 %v856, %v855
          %v860 = vpack.c.b16 %v858, %v857
          %vm863 = vcmask 261120
          %v865 = vsel %vm863, %v839, 0
          %867 = vmatprep.subr.bf16.mxu0 0
          %868 = vmatpush1.bf16.msra.mxu0 %v859
          %869 = vmatprep.subr.bf16.mxu0 0
          %870 = vmatpush1.bf16.msra.mxu0 %v860
          %871 = vmatprep.subr.bf16.mxu0 0
          %872 = vmatpush1.bf16.msra.mxu0 0
          %873 = vmatprep.subr.bf16.mxu0 0
          %874 = vmatpush1.bf16.msra.mxu0 0
          %875 = vmatprep.subr.bf16.mxu0 0
          %876 = vmatpush1.bf16.msra.mxu0 0
          %877 = vmatprep.subr.bf16.mxu0 0
          %878 = vmatpush1.bf16.msra.mxu0 0
          %879 = vmatprep.subr.bf16.mxu0 0
          %880 = vmatpush1.bf16.msra.mxu0 0
          %881 = vmatprep.subr.bf16.mxu0 0
          %882 = vmatpush1.bf16.msra.mxu0 0
          %883 = vmatprep.subr.bf16.mxu0 0
          %884 = vmatpush1.bf16.msra.mxu0 0
          %885 = vmatprep.subr.bf16.mxu0 0
          %886 = vmatpush1.bf16.msra.mxu0 0
          %887 = vmatprep.subr.bf16.mxu0 0
          %888 = vmatpush1.bf16.msra.mxu0 0
          %889 = vmatprep.subr.bf16.mxu0 0
          %890 = vmatpush1.bf16.msra.mxu0 0
          %891 = vmatprep.subr.bf16.mxu0 0
          %892 = vmatpush1.bf16.msra.mxu0 0
          %893 = vmatprep.subr.bf16.mxu0 0
          %894 = vmatpush1.bf16.msra.mxu0 0
          %895 = vmatprep.subr.bf16.mxu0 0
          %896 = vmatpush1.bf16.msra.mxu0 0
          %897 = vmatprep.subr.bf16.mxu0 0
          %898 = vmatpush1.bf16.msra.mxu0 0
          %899 = vmatprep.mubr.bf16.mxu0 0
          %900 = vmatmul.mubr.bf16.gmra.mrb[0].mxu0 %v865
          %v901 = vpop.f32.mrb[0].mxu0
          %v902 = vadd.f32 %v849, %v901
          %v903 = vpop.f32.mrb[0].mxu0
          %v904 = vpop.f32.mrb[0].mxu0
          %v905 = vpop.f32.mrb[0].mxu0
          %906 = vdwg.mxu0
          %908 = vrot.lane.b32.xlu0 %v902, 120
          %v909 = vpop.permute.xlu0 %908
          %911 = vrot.lane.b32.xlu0 %v902, 112
          %v912 = vpop.permute.xlu0 %911
          %914 = vrot.lane.b32.xlu0 %v902, 104
          %v915 = vpop.permute.xlu0 %914
          %v917 = vcombine.low %v902, %v912
          %v918 = vcombine.high %v902, %v912
          %v920 = vunpack.c.l.s4 1983009808
          %v921 = vunpack.c.0.s8 %v920
          %v922 = vlaneseq
          %v923 = vshrl.u32 %v922, 7
          %v924 = vsub.s32 %v921, %v923
          %v925 = vrot.slane %v917, %v924
          %v927 = vunpack.c.l.s4 1983009808
          %v928 = vunpack.c.0.s8 %v927
          %v929 = vlaneseq
          %v930 = vshrl.u32 %v929, 7
          %v931 = vsub.s32 %v928, %v930
          %v932 = vrot.slane %v918, %v931
          %v933 = vcombine.low %v909, %v915
          %v934 = vcombine.high %v909, %v915
          %v936 = vunpack.c.l.s4 1983009808
          %v937 = vunpack.c.0.s8 %v936
          %v938 = vlaneseq
          %v939 = vshrl.u32 %v938, 7
          %v940 = vsub.s32 %v937, %v939
          %v941 = vrot.slane %v933, %v940
          %v943 = vunpack.c.l.s4 1983009808
          %v944 = vunpack.c.0.s8 %v943
          %v945 = vlaneseq
          %v946 = vshrl.u32 %v945, 7
          %v947 = vsub.s32 %v944, %v946
          %v948 = vrot.slane %v934, %v947
          %v949 = vcombine.low %v925, %v941
          %v950 = vcombine.high %v925, %v941
          %v952 = vunpack.c.l.s4 1934713408
          %v953 = vunpack.c.0.s8 %v952
          %v954 = vlaneseq
          %v955 = vshrl.u32 %v954, 7
          %v956 = vsub.s32 %v953, %v955
          %v957 = vrot.slane %v949, %v956
          %v959 = vunpack.c.l.s4 1934713408
          %v960 = vunpack.c.0.s8 %v959
          %v961 = vlaneseq
          %v962 = vshrl.u32 %v961, 7
          %v963 = vsub.s32 %v960, %v962
          %v964 = vrot.slane %v950, %v963
          %v965 = vcombine.low %v932, %v948
          %v966 = vcombine.high %v932, %v948
          %v968 = vunpack.c.l.s4 1934713408
          %v969 = vunpack.c.0.s8 %v968
          %v970 = vlaneseq
          %v971 = vshrl.u32 %v970, 7
          %v972 = vsub.s32 %v969, %v971
          %v973 = vrot.slane %v965, %v972
          %v975 = vunpack.c.l.s4 1934713408
          %v976 = vunpack.c.0.s8 %v975
          %v977 = vlaneseq
          %v978 = vshrl.u32 %v977, 7
          %v979 = vsub.s32 %v976, %v978
          %v980 = vrot.slane %v966, %v979
          %v981 = vcombine.high %v957, 0.0
          %v982 = vcombine.high %v964, 0.0
          %v983 = vcombine.high %v973, 0.0
          %v984 = vcombine.high %v980, 0.0
          %v985 = vcombine.low %v957, %v964
          %v987 = vunpack.c.l.s4 1983009808
          %v988 = vunpack.c.0.s8 %v987
          %v989 = vlaneseq
          %v990 = vshrl.u32 %v989, 7
          %v991 = vsub.s32 %v988, %v990
          %v992 = vrot.slane %v985, %v991
          %v993 = vcombine.low %v981, %v982
          %v995 = vunpack.c.l.s4 1983009808
          %v996 = vunpack.c.0.s8 %v995
          %v997 = vlaneseq
          %v998 = vshrl.u32 %v997, 7
          %v999 = vsub.s32 %v996, %v998
          %v1000 = vrot.slane %v993, %v999
          %v1001 = vcombine.low %v973, %v980
          %v1003 = vunpack.c.l.s4 1983009808
          %v1004 = vunpack.c.0.s8 %v1003
          %v1005 = vlaneseq
          %v1006 = vshrl.u32 %v1005, 7
          %v1007 = vsub.s32 %v1004, %v1006
          %v1008 = vrot.slane %v1001, %v1007
          %v1009 = vcombine.low %v983, %v984
          %v1011 = vunpack.c.l.s4 1983009808
          %v1012 = vunpack.c.0.s8 %v1011
          %v1013 = vlaneseq
          %v1014 = vshrl.u32 %v1013, 7
          %v1015 = vsub.s32 %v1012, %v1014
          %v1016 = vrot.slane %v1009, %v1015
          %v1017 = vcombine.low %v992, %v1000
          %v1018 = vcombine.high %v992, %v1000
          %v1020 = vunpack.c.l.s4 1934713408
          %v1021 = vunpack.c.0.s8 %v1020
          %v1022 = vlaneseq
          %v1023 = vshrl.u32 %v1022, 7
          %v1024 = vsub.s32 %v1021, %v1023
          %v1025 = vrot.slane %v1017, %v1024
          %v1027 = vunpack.c.l.s4 1934713408
          %v1028 = vunpack.c.0.s8 %v1027
          %v1029 = vlaneseq
          %v1030 = vshrl.u32 %v1029, 7
          %v1031 = vsub.s32 %v1028, %v1030
          %v1032 = vrot.slane %v1018, %v1031
          %v1033 = vcombine.low %v1008, %v1016
          %v1034 = vcombine.high %v1008, %v1016
          %v1036 = vunpack.c.l.s4 1934713408
          %v1037 = vunpack.c.0.s8 %v1036
          %v1038 = vlaneseq
          %v1039 = vshrl.u32 %v1038, 7
          %v1040 = vsub.s32 %v1037, %v1039
          %v1041 = vrot.slane %v1033, %v1040
          %v1043 = vunpack.c.l.s4 1934713408
          %v1044 = vunpack.c.0.s8 %v1043
          %v1045 = vlaneseq
          %v1046 = vshrl.u32 %v1045, 7
          %v1047 = vsub.s32 %v1044, %v1046
          %v1048 = vrot.slane %v1034, %v1047
          %v1049 = vcombine.low %v1025, %v1041
          %v1050 = vcombine.high %v1025, %v1041
          %v1051 = vcombine.low %v1032, %v1048
          %v1052 = vcombine.high %v1032, %v1048
          %v1053 = vpack.c.bf16 %v1049, %v1049
          %v1054 = vpack.c.bf16 %v1050, %v1050
          %v1055 = vpack.c.bf16 %v1051, %v1051
          %v1056 = vpack.c.bf16 %v1052, %v1052
          %vm1057 = vcmask 60416
          %1058 = vst.msk [vmem:[#allocation2] sm:$0xf] %vm1057, %v1053
          %1059 = vst.msk [vmem:[#allocation2 + $0x4] sm:$0xf] %vm1057, %v1054
          %1060 = vst.msk [vmem:[#allocation2 + $0x8] sm:$0xf] %vm1057, %v1055
          %1061 = vst.msk [vmem:[#allocation2 + $0xc] sm:$0xf] %vm1057, %v1056
          %1062 = vrot.lane.b32.xlu0 %v902, 96
          %v1063 = vpop.permute.xlu0 %1062
          %1064 = vrot.lane.b32.xlu0 %v909, 96
          %v1065 = vpop.permute.xlu0 %1064
          %1066 = vrot.lane.b32.xlu0 %v912, 96
          %v1067 = vpop.permute.xlu0 %1066
          %1068 = vrot.lane.b32.xlu0 %v915, 96
          %v1069 = vpop.permute.xlu0 %1068
          %v1074 = vcombine.low %v1063, %v1067
          %v1075 = vcombine.high %v1063, %v1067
          %v1077 = vunpack.c.l.s4 1983009808
          %v1078 = vunpack.c.0.s8 %v1077
          %v1079 = vlaneseq
          %v1080 = vshrl.u32 %v1079, 7
          %v1081 = vsub.s32 %v1078, %v1080
          %v1082 = vrot.slane %v1074, %v1081
          %v1084 = vunpack.c.l.s4 1983009808
          %v1085 = vunpack.c.0.s8 %v1084
          %v1086 = vlaneseq
          %v1087 = vshrl.u32 %v1086, 7
          %v1088 = vsub.s32 %v1085, %v1087
          %v1089 = vrot.slane %v1075, %v1088
          %v1090 = vcombine.low %v1065, %v1069
          %v1091 = vcombine.high %v1065, %v1069
          %v1093 = vunpack.c.l.s4 1983009808
          %v1094 = vunpack.c.0.s8 %v1093
          %v1095 = vlaneseq
          %v1096 = vshrl.u32 %v1095, 7
          %v1097 = vsub.s32 %v1094, %v1096
          %v1098 = vrot.slane %v1090, %v1097
          %v1100 = vunpack.c.l.s4 1983009808
          %v1101 = vunpack.c.0.s8 %v1100
          %v1102 = vlaneseq
          %v1103 = vshrl.u32 %v1102, 7
          %v1104 = vsub.s32 %v1101, %v1103
          %v1105 = vrot.slane %v1091, %v1104
          %v1106 = vcombine.low %v1082, %v1098
          %v1107 = vcombine.high %v1082, %v1098
          %v1109 = vunpack.c.l.s4 1934713408
          %v1110 = vunpack.c.0.s8 %v1109
          %v1111 = vlaneseq
          %v1112 = vshrl.u32 %v1111, 7
          %v1113 = vsub.s32 %v1110, %v1112
          %v1114 = vrot.slane %v1106, %v1113
          %v1116 = vunpack.c.l.s4 1934713408
          %v1117 = vunpack.c.0.s8 %v1116
          %v1118 = vlaneseq
          %v1119 = vshrl.u32 %v1118, 7
          %v1120 = vsub.s32 %v1117, %v1119
          %v1121 = vrot.slane %v1107, %v1120
          %v1122 = vcombine.low %v1089, %v1105
          %v1123 = vcombine.high %v1089, %v1105
          %v1125 = vunpack.c.l.s4 1934713408
          %v1126 = vunpack.c.0.s8 %v1125
          %v1127 = vlaneseq
          %v1128 = vshrl.u32 %v1127, 7
          %v1129 = vsub.s32 %v1126, %v1128
          %v1130 = vrot.slane %v1122, %v1129
          %v1132 = vunpack.c.l.s4 1934713408
          %v1133 = vunpack.c.0.s8 %v1132
          %v1134 = vlaneseq
          %v1135 = vshrl.u32 %v1134, 7
          %v1136 = vsub.s32 %v1133, %v1135
          %v1137 = vrot.slane %v1123, %v1136
          %v1138 = vcombine.high %v1114, 0.0
          %v1139 = vcombine.high %v1121, 0.0
          %v1140 = vcombine.high %v1130, 0.0
          %v1141 = vcombine.high %v1137, 0.0
          %v1142 = vcombine.low %v1114, %v1121
          %v1144 = vunpack.c.l.s4 1983009808
          %v1145 = vunpack.c.0.s8 %v1144
          %v1146 = vlaneseq
          %v1147 = vshrl.u32 %v1146, 7
          %v1148 = vsub.s32 %v1145, %v1147
          %v1149 = vrot.slane %v1142, %v1148
          %v1150 = vcombine.low %v1138, %v1139
          %v1152 = vunpack.c.l.s4 1983009808
          %v1153 = vunpack.c.0.s8 %v1152
          %v1154 = vlaneseq
          %v1155 = vshrl.u32 %v1154, 7
          %v1156 = vsub.s32 %v1153, %v1155
          %v1157 = vrot.slane %v1150, %v1156
          %v1158 = vcombine.low %v1130, %v1137
          %v1160 = vunpack.c.l.s4 1983009808
          %v1161 = vunpack.c.0.s8 %v1160
          %v1162 = vlaneseq
          %v1163 = vshrl.u32 %v1162, 7
          %v1164 = vsub.s32 %v1161, %v1163
          %v1165 = vrot.slane %v1158, %v1164
          %v1166 = vcombine.low %v1140, %v1141
          %v1168 = vunpack.c.l.s4 1983009808
          %v1169 = vunpack.c.0.s8 %v1168
          %v1170 = vlaneseq
          %v1171 = vshrl.u32 %v1170, 7
          %v1172 = vsub.s32 %v1169, %v1171
          %v1173 = vrot.slane %v1166, %v1172
          %v1174 = vcombine.low %v1149, %v1157
          %v1175 = vcombine.high %v1149, %v1157
          %v1177 = vunpack.c.l.s4 1934713408
          %v1178 = vunpack.c.0.s8 %v1177
          %v1179 = vlaneseq
          %v1180 = vshrl.u32 %v1179, 7
          %v1181 = vsub.s32 %v1178, %v1180
          %v1182 = vrot.slane %v1174, %v1181
          %v1184 = vunpack.c.l.s4 1934713408
          %v1185 = vunpack.c.0.s8 %v1184
          %v1186 = vlaneseq
          %v1187 = vshrl.u32 %v1186, 7
          %v1188 = vsub.s32 %v1185, %v1187
          %v1189 = vrot.slane %v1175, %v1188
          %v1190 = vcombine.low %v1165, %v1173
          %v1191 = vcombine.high %v1165, %v1173
          %v1193 = vunpack.c.l.s4 1934713408
          %v1194 = vunpack.c.0.s8 %v1193
          %v1195 = vlaneseq
          %v1196 = vshrl.u32 %v1195, 7
          %v1197 = vsub.s32 %v1194, %v1196
          %v1198 = vrot.slane %v1190, %v1197
          %v1200 = vunpack.c.l.s4 1934713408
          %v1201 = vunpack.c.0.s8 %v1200
          %v1202 = vlaneseq
          %v1203 = vshrl.u32 %v1202, 7
          %v1204 = vsub.s32 %v1201, %v1203
          %v1205 = vrot.slane %v1191, %v1204
          %v1206 = vcombine.low %v1182, %v1198
          %v1207 = vcombine.high %v1182, %v1198
          %v1208 = vcombine.low %v1189, %v1205
          %v1209 = vcombine.high %v1189, %v1205
          %v1210 = vpack.c.bf16 %v1206, %v1206
          %v1211 = vpack.c.bf16 %v1207, %v1207
          %v1212 = vpack.c.bf16 %v1208, %v1208
          %v1213 = vpack.c.bf16 %v1209, %v1209
          %1214 = vst.msk [vmem:[#allocation3] sm:$0xf] %vm1057, %v1210
          %1215 = vst.msk [vmem:[#allocation3 + $0x4] sm:$0xf] %vm1057, %v1211
          %1216 = vst.msk [vmem:[#allocation3 + $0x8] sm:$0xf] %vm1057, %v1212
          %1217 = vst.msk [vmem:[#allocation3 + $0xc] sm:$0xf] %vm1057, %v1213
        $region160: #{tpu_custom_call.1} parent=87 // pred_fallthru
          _
        %v1218 = vld [vmem:[%s701] sm:$0xff]
        %v1219 = vld [vmem:[%s718] sm:$0x1]
        %v1220 = vpack.c.bf16 %v1218, %v1218
        %v1221 = vld [vmem:[#allocation10] sm:$0xf]
        %v1222 = vld [vmem:[#allocation10 + $0x4] sm:$0xf]
        %v1223 = vld [vmem:[#allocation10 + $0x8] sm:$0xf]
        %v1224 = vld [vmem:[#allocation10 + $0xc] sm:$0xf]
        %v1225 = vld [vmem:[#allocation12] sm:$0x1]
        %v1227 = vlaneseq
        %v1228 = vshrl.u32 %v1227, 7
        %v1229 = vsub.s32 0, %v1228
        %v1230 = vrot.slane %v1225, %v1229
        %v1236 = vunpack.c.l.b16 %v1221
        %v1237 = vunpack.c.l.b16 %v1222
        %v1238 = vunpack.c.l.b16 %v1223
        %v1239 = vunpack.c.l.b16 %v1224
        %v1240 = vpack.c.b16 %v1237, %v1236
        %v1241 = vpack.c.b16 %v1239, %v1238
        %vm1244 = vcmask 261120
        %v1246 = vsel %vm1244, %v1220, 0
        %1248 = vmatprep.subr.bf16.mxu0 0
        %1249 = vmatpush1.bf16.msra.mxu0 %v1240
        %1250 = vmatprep.subr.bf16.mxu0 0
        %1251 = vmatpush1.bf16.msra.mxu0 %v1241
        %1252 = vmatprep.subr.bf16.mxu0 0
        %1253 = vmatpush1.bf16.msra.mxu0 0
        %1254 = vmatprep.subr.bf16.mxu0 0
        %1255 = vmatpush1.bf16.msra.mxu0 0
        %1256 = vmatprep.subr.bf16.mxu0 0
        %1257 = vmatpush1.bf16.msra.mxu0 0
        %1258 = vmatprep.subr.bf16.mxu0 0
        %1259 = vmatpush1.bf16.msra.mxu0 0
        %1260 = vmatprep.subr.bf16.mxu0 0
        %1261 = vmatpush1.bf16.msra.mxu0 0
        %1262 = vmatprep.subr.bf16.mxu0 0
        %1263 = vmatpush1.bf16.msra.mxu0 0
        %1264 = vmatprep.subr.bf16.mxu0 0
        %1265 = vmatpush1.bf16.msra.mxu0 0
        %1266 = vmatprep.subr.bf16.mxu0 0
        %1267 = vmatpush1.bf16.msra.mxu0 0
        %1268 = vmatprep.subr.bf16.mxu0 0
        %1269 = vmatpush1.bf16.msra.mxu0 0
        %1270 = vmatprep.subr.bf16.mxu0 0
        %1271 = vmatpush1.bf16.msra.mxu0 0
        %1272 = vmatprep.subr.bf16.mxu0 0
        %1273 = vmatpush1.bf16.msra.mxu0 0
        %1274 = vmatprep.subr.bf16.mxu0 0
        %1275 = vmatpush1.bf16.msra.mxu0 0
        %1276 = vmatprep.subr.bf16.mxu0 0
        %1277 = vmatpush1.bf16.msra.mxu0 0
        %1278 = vmatprep.subr.bf16.mxu0 0
        %1279 = vmatpush1.bf16.msra.mxu0 0
        %1280 = vmatprep.mubr.bf16.mxu0 0
        %1281 = vmatmul.mubr.bf16.gmra.mrb[0].mxu0 %v1246
        %v1282 = vpop.f32.mrb[0].mxu0
        %v1283 = vadd.f32 %v1230, %v1282
        %v1284 = vpop.f32.mrb[0].mxu0
        %v1285 = vpop.f32.mrb[0].mxu0
        %v1286 = vpop.f32.mrb[0].mxu0
        %1287 = vdwg.mxu0
        %1289 = vrot.lane.b32.xlu0 %v1283, 120
        %v1290 = vpop.permute.xlu0 %1289
        %1292 = vrot.lane.b32.xlu0 %v1283, 112
        %v1293 = vpop.permute.xlu0 %1292
        %1295 = vrot.lane.b32.xlu0 %v1283, 104
        %v1296 = vpop.permute.xlu0 %1295
        %v1298 = vcombine.low %v1283, %v1293
        %v1299 = vcombine.high %v1283, %v1293
        %v1301 = vunpack.c.l.s4 1983009808
        %v1302 = vunpack.c.0.s8 %v1301
        %v1303 = vlaneseq
        %v1304 = vshrl.u32 %v1303, 7
        %v1305 = vsub.s32 %v1302, %v1304
        %v1306 = vrot.slane %v1298, %v1305
        %v1308 = vunpack.c.l.s4 1983009808
        %v1309 = vunpack.c.0.s8 %v1308
        %v1310 = vlaneseq
        %v1311 = vshrl.u32 %v1310, 7
        %v1312 = vsub.s32 %v1309, %v1311
        %v1313 = vrot.slane %v1299, %v1312
        %v1314 = vcombine.low %v1290, %v1296
        %v1315 = vcombine.high %v1290, %v1296
        %v1317 = vunpack.c.l.s4 1983009808
        %v1318 = vunpack.c.0.s8 %v1317
        %v1319 = vlaneseq
        %v1320 = vshrl.u32 %v1319, 7
        %v1321 = vsub.s32 %v1318, %v1320
        %v1322 = vrot.slane %v1314, %v1321
        %v1324 = vunpack.c.l.s4 1983009808
        %v1325 = vunpack.c.0.s8 %v1324
        %v1326 = vlaneseq
        %v1327 = vshrl.u32 %v1326, 7
        %v1328 = vsub.s32 %v1325, %v1327
        %v1329 = vrot.slane %v1315, %v1328
        %v1330 = vcombine.low %v1306, %v1322
        %v1331 = vcombine.high %v1306, %v1322
        %v1333 = vunpack.c.l.s4 1934713408
        %v1334 = vunpack.c.0.s8 %v1333
        %v1335 = vlaneseq
        %v1336 = vshrl.u32 %v1335, 7
        %v1337 = vsub.s32 %v1334, %v1336
        %v1338 = vrot.slane %v1330, %v1337
        %v1340 = vunpack.c.l.s4 1934713408
        %v1341 = vunpack.c.0.s8 %v1340
        %v1342 = vlaneseq
        %v1343 = vshrl.u32 %v1342, 7
        %v1344 = vsub.s32 %v1341, %v1343
        %v1345 = vrot.slane %v1331, %v1344
        %v1346 = vcombine.low %v1313, %v1329
        %v1347 = vcombine.high %v1313, %v1329
        %v1349 = vunpack.c.l.s4 1934713408
        %v1350 = vunpack.c.0.s8 %v1349
        %v1351 = vlaneseq
        %v1352 = vshrl.u32 %v1351, 7
        %v1353 = vsub.s32 %v1350, %v1352
        %v1354 = vrot.slane %v1346, %v1353
        %v1356 = vunpack.c.l.s4 1934713408
        %v1357 = vunpack.c.0.s8 %v1356
        %v1358 = vlaneseq
        %v1359 = vshrl.u32 %v1358, 7
        %v1360 = vsub.s32 %v1357, %v1359
        %v1361 = vrot.slane %v1347, %v1360
        %v1362 = vcombine.high %v1338, 0.0
        %v1363 = vcombine.high %v1345, 0.0
        %v1364 = vcombine.high %v1354, 0.0
        %v1365 = vcombine.high %v1361, 0.0
        %v1366 = vcombine.low %v1338, %v1345
        %v1368 = vunpack.c.l.s4 1983009808
        %v1369 = vunpack.c.0.s8 %v1368
        %v1370 = vlaneseq
        %v1371 = vshrl.u32 %v1370, 7
        %v1372 = vsub.s32 %v1369, %v1371
        %v1373 = vrot.slane %v1366, %v1372
        %v1374 = vcombine.low %v1362, %v1363
        %v1376 = vunpack.c.l.s4 1983009808
        %v1377 = vunpack.c.0.s8 %v1376
        %v1378 = vlaneseq
        %v1379 = vshrl.u32 %v1378, 7
        %v1380 = vsub.s32 %v1377, %v1379
        %v1381 = vrot.slane %v1374, %v1380
        %v1382 = vcombine.low %v1354, %v1361
        %v1384 = vunpack.c.l.s4 1983009808
        %v1385 = vunpack.c.0.s8 %v1384
        %v1386 = vlaneseq
        %v1387 = vshrl.u32 %v1386, 7
        %v1388 = vsub.s32 %v1385, %v1387
        %v1389 = vrot.slane %v1382, %v1388
        %v1390 = vcombine.low %v1364, %v1365
        %v1392 = vunpack.c.l.s4 1983009808
        %v1393 = vunpack.c.0.s8 %v1392
        %v1394 = vlaneseq
        %v1395 = vshrl.u32 %v1394, 7
        %v1396 = vsub.s32 %v1393, %v1395
        %v1397 = vrot.slane %v1390, %v1396
        %v1398 = vcombine.low %v1373, %v1381
        %v1399 = vcombine.high %v1373, %v1381
        %v1401 = vunpack.c.l.s4 1934713408
        %v1402 = vunpack.c.0.s8 %v1401
        %v1403 = vlaneseq
        %v1404 = vshrl.u32 %v1403, 7
        %v1405 = vsub.s32 %v1402, %v1404
        %v1406 = vrot.slane %v1398, %v1405
        %v1408 = vunpack.c.l.s4 1934713408
        %v1409 = vunpack.c.0.s8 %v1408
        %v1410 = vlaneseq
        %v1411 = vshrl.u32 %v1410, 7
        %v1412 = vsub.s32 %v1409, %v1411
        %v1413 = vrot.slane %v1399, %v1412
        %v1414 = vcombine.low %v1389, %v1397
        %v1415 = vcombine.high %v1389, %v1397
        %v1417 = vunpack.c.l.s4 1934713408
        %v1418 = vunpack.c.0.s8 %v1417
        %v1419 = vlaneseq
        %v1420 = vshrl.u32 %v1419, 7
        %v1421 = vsub.s32 %v1418, %v1420
        %v1422 = vrot.slane %v1414, %v1421
        %v1424 = vunpack.c.l.s4 1934713408
        %v1425 = vunpack.c.0.s8 %v1424
        %v1426 = vlaneseq
        %v1427 = vshrl.u32 %v1426, 7
        %v1428 = vsub.s32 %v1425, %v1427
        %v1429 = vrot.slane %v1415, %v1428
        %v1430 = vcombine.low %v1406, %v1422
        %v1431 = vcombine.high %v1406, %v1422
        %v1432 = vcombine.low %v1413, %v1429
        %v1433 = vcombine.high %v1413, %v1429
        %v1434 = vpack.c.bf16 %v1430, %v1430
        %v1435 = vpack.c.bf16 %v1431, %v1431
        %v1436 = vpack.c.bf16 %v1432, %v1432
        %v1437 = vpack.c.bf16 %v1433, %v1433
        %v1438 = vld [vmem:[#allocation2] sm:$0xf]
        %v1439 = vld [vmem:[#allocation2 + $0x4] sm:$0xf]
        %v1440 = vld [vmem:[#allocation2 + $0x8] sm:$0xf]
        %v1441 = vld [vmem:[#allocation2 + $0xc] sm:$0xf]
        %v1442 = vld [vmem:[#allocation3] sm:$0xf]
        %v1443 = vld [vmem:[#allocation3 + $0x4] sm:$0xf]
        %v1444 = vld [vmem:[#allocation3 + $0x8] sm:$0xf]
        %v1445 = vld [vmem:[#allocation3 + $0xc] sm:$0xf]
        %v1447 = vlaneseq
        %v1448 = vshrl.u32 %v1447, 7
        %v1449 = vsub.s32 0, %v1448
        %v1450 = vrot.slane %v1219, %v1449
        %vm1452 = vcmask 64512
        %v1454 = vsel %vm1452, %v1434, 0
        %v1457 = vsel %vm1452, %v1438, 0
        %1459 = vmatprep.subr.bf16.mxu0 0
        %1460 = vmatpush1.bf16.xpose.msra.mxu0 %v1457
        %1461 = vmatprep.subr.bf16.mxu0 0
        %1462 = vmatpush1.bf16.xpose.msra.mxu0 0
        %1463 = vmatprep.subr.bf16.mxu0 0
        %1464 = vmatpush1.bf16.xpose.msra.mxu0 0
        %1465 = vmatprep.subr.bf16.mxu0 0
        %1466 = vmatpush1.bf16.xpose.msra.mxu0 0
        %1467 = vmatprep.subr.bf16.mxu0 0
        %1468 = vmatpush1.bf16.xpose.msra.mxu0 0
        %1469 = vmatprep.subr.bf16.mxu0 0
        %1470 = vmatpush1.bf16.xpose.msra.mxu0 0
        %1471 = vmatprep.subr.bf16.mxu0 0
        %1472 = vmatpush1.bf16.xpose.msra.mxu0 0
        %1473 = vmatprep.subr.bf16.mxu0 0
        %1474 = vmatpush1.bf16.xpose.msra.mxu0 0
        %1475 = vmatprep.subr.bf16.mxu0 0
        %1476 = vmatpush1.bf16.xpose.msra.mxu0 0
        %1477 = vmatprep.subr.bf16.mxu0 0
        %1478 = vmatpush1.bf16.xpose.msra.mxu0 0
        %1479 = vmatprep.subr.bf16.mxu0 0
        %1480 = vmatpush1.bf16.xpose.msra.mxu0 0
        %1481 = vmatprep.subr.bf16.mxu0 0
        %1482 = vmatpush1.bf16.xpose.msra.mxu0 0
        %1483 = vmatprep.subr.bf16.mxu0 0
        %1484 = vmatpush1.bf16.xpose.msra.mxu0 0
        %1485 = vmatprep.subr.bf16.mxu0 0
        %1486 = vmatpush1.bf16.xpose.msra.mxu0 0
        %1487 = vmatprep.subr.bf16.mxu0 0
        %1488 = vmatpush1.bf16.xpose.msra.mxu0 0
        %1489 = vmatprep.subr.bf16.mxu0 0
        %1490 = vmatpush1.bf16.xpose.msra.mxu0 0
        %1491 = vmatprep.mubr.bf16.mxu0 0
        %1492 = vmatmul.mubr.bf16.gmra.mrb[0].mxu0 %v1454
        %v1493 = vpop.f32.mrb[0].mxu0
        %v1494 = vadd.f32 %v1450, %v1493
        %v1495 = vpop.f32.mrb[0].mxu0
        %v1496 = vpop.f32.mrb[0].mxu0
        %v1497 = vpop.f32.mrb[0].mxu0
        %1498 = vdwg.mxu0
        %v1500 = vsel %vm1452, %v1435, 0
        %v1503 = vsel %vm1452, %v1439, 0
        %1505 = vmatprep.subr.bf16.mxu0 0
        %1506 = vmatpush1.bf16.xpose.msra.mxu0 %v1503
        %1507 = vmatprep.subr.bf16.mxu0 0
        %1508 = vmatpush1.bf16.xpose.msra.mxu0 0
        %1509 = vmatprep.subr.bf16.mxu0 0
        %1510 = vmatpush1.bf16.xpose.msra.mxu0 0
        %1511 = vmatprep.subr.bf16.mxu0 0
        %1512 = vmatpush1.bf16.xpose.msra.mxu0 0
        %1513 = vmatprep.subr.bf16.mxu0 0
        %1514 = vmatpush1.bf16.xpose.msra.mxu0 0
        %1515 = vmatprep.subr.bf16.mxu0 0
        %1516 = vmatpush1.bf16.xpose.msra.mxu0 0
        %1517 = vmatprep.subr.bf16.mxu0 0
        %1518 = vmatpush1.bf16.xpose.msra.mxu0 0
        %1519 = vmatprep.subr.bf16.mxu0 0
        %1520 = vmatpush1.bf16.xpose.msra.mxu0 0
        %1521 = vmatprep.subr.bf16.mxu0 0
        %1522 = vmatpush1.bf16.xpose.msra.mxu0 0
        %1523 = vmatprep.subr.bf16.mxu0 0
        %1524 = vmatpush1.bf16.xpose.msra.mxu0 0
        %1525 = vmatprep.subr.bf16.mxu0 0
        %1526 = vmatpush1.bf16.xpose.msra.mxu0 0
        %1527 = vmatprep.subr.bf16.mxu0 0
        %1528 = vmatpush1.bf16.xpose.msra.mxu0 0
        %1529 = vmatprep.subr.bf16.mxu0 0
        %1530 = vmatpush1.bf16.xpose.msra.mxu0 0
        %1531 = vmatprep.subr.bf16.mxu0 0
        %1532 = vmatpush1.bf16.xpose.msra.mxu0 0
        %1533 = vmatprep.subr.bf16.mxu0 0
        %1534 = vmatpush1.bf16.xpose.msra.mxu0 0
        %1535 = vmatprep.subr.bf16.mxu0 0
        %1536 = vmatpush1.bf16.xpose.msra.mxu0 0
        %1537 = vmatprep.mubr.bf16.mxu0 0
        %1538 = vmatmul.mubr.bf16.gmra.mrb[0].mxu0 %v1500
        %v1539 = vpop.f32.mrb[0].mxu0
        %v1540 = vadd.f32 %v1450, %v1539
        %v1541 = vpop.f32.mrb[0].mxu0
        %v1542 = vpop.f32.mrb[0].mxu0
        %v1543 = vpop.f32.mrb[0].mxu0
        %1544 = vdwg.mxu0
        %v1546 = vsel %vm1452, %v1436, 0
        %v1549 = vsel %vm1452, %v1440, 0
        %1551 = vmatprep.subr.bf16.mxu0 0
        %1552 = vmatpush1.bf16.xpose.msra.mxu0 %v1549
        %1553 = vmatprep.subr.bf16.mxu0 0
        %1554 = vmatpush1.bf16.xpose.msra.mxu0 0
        %1555 = vmatprep.subr.bf16.mxu0 0
        %1556 = vmatpush1.bf16.xpose.msra.mxu0 0
        %1557 = vmatprep.subr.bf16.mxu0 0
        %1558 = vmatpush1.bf16.xpose.msra.mxu0 0
        %1559 = vmatprep.subr.bf16.mxu0 0
        %1560 = vmatpush1.bf16.xpose.msra.mxu0 0
        %1561 = vmatprep.subr.bf16.mxu0 0
        %1562 = vmatpush1.bf16.xpose.msra.mxu0 0
        %1563 = vmatprep.subr.bf16.mxu0 0
        %1564 = vmatpush1.bf16.xpose.msra.mxu0 0
        %1565 = vmatprep.subr.bf16.mxu0 0
        %1566 = vmatpush1.bf16.xpose.msra.mxu0 0
        %1567 = vmatprep.subr.bf16.mxu0 0
        %1568 = vmatpush1.bf16.xpose.msra.mxu0 0
        %1569 = vmatprep.subr.bf16.mxu0 0
        %1570 = vmatpush1.bf16.xpose.msra.mxu0 0
        %1571 = vmatprep.subr.bf16.mxu0 0
        %1572 = vmatpush1.bf16.xpose.msra.mxu0 0
        %1573 = vmatprep.subr.bf16.mxu0 0
        %1574 = vmatpush1.bf16.xpose.msra.mxu0 0
        %1575 = vmatprep.subr.bf16.mxu0 0
        %1576 = vmatpush1.bf16.xpose.msra.mxu0 0
        %1577 = vmatprep.subr.bf16.mxu0 0
        %1578 = vmatpush1.bf16.xpose.msra.mxu0 0
        %1579 = vmatprep.subr.bf16.mxu0 0
        %1580 = vmatpush1.bf16.xpose.msra.mxu0 0
        %1581 = vmatprep.subr.bf16.mxu0 0
        %1582 = vmatpush1.bf16.xpose.msra.mxu0 0
        %1583 = vmatprep.mubr.bf16.mxu0 0
        %1584 = vmatmul.mubr.bf16.gmra.mrb[0].mxu0 %v1546
        %v1585 = vpop.f32.mrb[0].mxu0
        %v1586 = vadd.f32 %v1450, %v1585
        %v1587 = vpop.f32.mrb[0].mxu0
        %v1588 = vpop.f32.mrb[0].mxu0
        %v1589 = vpop.f32.mrb[0].mxu0
        %1590 = vdwg.mxu0
        %v1592 = vsel %vm1452, %v1437, 0
        %v1595 = vsel %vm1452, %v1441, 0
        %1597 = vmatprep.subr.bf16.mxu0 0
        %1598 = vmatpush1.bf16.xpose.msra.mxu0 %v1595
        %1599 = vmatprep.subr.bf16.mxu0 0
        %1600 = vmatpush1.bf16.xpose.msra.mxu0 0
        %1601 = vmatprep.subr.bf16.mxu0 0
        %1602 = vmatpush1.bf16.xpose.msra.mxu0 0
        %1603 = vmatprep.subr.bf16.mxu0 0
        %1604 = vmatpush1.bf16.xpose.msra.mxu0 0
        %1605 = vmatprep.subr.bf16.mxu0 0
        %1606 = vmatpush1.bf16.xpose.msra.mxu0 0
        %1607 = vmatprep.subr.bf16.mxu0 0
        %1608 = vmatpush1.bf16.xpose.msra.mxu0 0
        %1609 = vmatprep.subr.bf16.mxu0 0
        %1610 = vmatpush1.bf16.xpose.msra.mxu0 0
        %1611 = vmatprep.subr.bf16.mxu0 0
        %1612 = vmatpush1.bf16.xpose.msra.mxu0 0
        %1613 = vmatprep.subr.bf16.mxu0 0
        %1614 = vmatpush1.bf16.xpose.msra.mxu0 0
        %1615 = vmatprep.subr.bf16.mxu0 0
        %1616 = vmatpush1.bf16.xpose.msra.mxu0 0
        %1617 = vmatprep.subr.bf16.mxu0 0
        %1618 = vmatpush1.bf16.xpose.msra.mxu0 0
        %1619 = vmatprep.subr.bf16.mxu0 0
        %1620 = vmatpush1.bf16.xpose.msra.mxu0 0
        %1621 = vmatprep.subr.bf16.mxu0 0
        %1622 = vmatpush1.bf16.xpose.msra.mxu0 0
        %1623 = vmatprep.subr.bf16.mxu0 0
        %1624 = vmatpush1.bf16.xpose.msra.mxu0 0
        %1625 = vmatprep.subr.bf16.mxu0 0
        %1626 = vmatpush1.bf16.xpose.msra.mxu0 0
        %1627 = vmatprep.subr.bf16.mxu0 0
        %1628 = vmatpush1.bf16.xpose.msra.mxu0 0
        %1629 = vmatprep.mubr.bf16.mxu0 0
        %1630 = vmatmul.mubr.bf16.gmra.mrb[0].mxu0 %v1592
        %v1631 = vpop.f32.mrb[0].mxu0
        %v1632 = vadd.f32 %v1450, %v1631
        %v1633 = vpop.f32.mrb[0].mxu0
        %v1634 = vpop.f32.mrb[0].mxu0
        %v1635 = vpop.f32.mrb[0].mxu0
        %1636 = vdwg.mxu0
        %v1637 = vsel %vm1452, %v1494, -inf
        %1638 = vmax.xlane.f32.xlu0 %v1637
        %v1639 = vpop.xlane.xlu0 %1638
        %v1640 = vsel %vm1452, %v1540, -inf
        %1641 = vmax.xlane.f32.xlu0 %v1640
        %v1642 = vpop.xlane.xlu0 %1641
        %v1643 = vsel %vm1452, %v1586, -inf
        %1644 = vmax.xlane.f32.xlu0 %v1643
        %v1645 = vpop.xlane.xlu0 %1644
        %v1646 = vsel %vm1452, %v1632, -inf
        %1647 = vmax.xlane.f32.xlu0 %v1646
        %v1648 = vpop.xlane.xlu0 %1647
        %v1649 = vsub.f32 %v1494, %v1639
        %v1650 = vsub.f32 %v1540, %v1642
        %v1651 = vsub.f32 %v1586, %v1645
        %v1652 = vsub.f32 %v1632, %v1648
        %v1653 = vmul.f32 %v1649, 1.442695
        %v1654 = vpow.pop %v1653
        %v1655 = vmul.f32 %v1650, 1.442695
        %v1656 = vpow.pop %v1655
        %v1657 = vmul.f32 %v1651, 1.442695
        %v1658 = vpow.pop %v1657
        %v1659 = vmul.f32 %v1652, 1.442695
        %v1660 = vpow.pop %v1659
        %v1661 = vsel %vm1452, %v1654, 0.0
        %1662 = vadd.xlane.f32.xlu0 %v1661
        %v1663 = vpop.xlane.xlu0 %1662
        %v1664 = vsel %vm1452, %v1656, 0.0
        %1665 = vadd.xlane.f32.xlu0 %v1664
        %v1666 = vpop.xlane.xlu0 %1665
        %v1667 = vsel %vm1452, %v1658, 0.0
        %1668 = vadd.xlane.f32.xlu0 %v1667
        %v1669 = vpop.xlane.xlu0 %1668
        %v1670 = vsel %vm1452, %v1660, 0.0
        %1671 = vadd.xlane.f32.xlu0 %v1670
        %v1672 = vpop.xlane.xlu0 %1671
        %v1673 = vrcp.pop %v1663
        %v1674 = vrcp.pop %v1666
        %v1675 = vrcp.pop %v1669
        %v1676 = vrcp.pop %v1672
        %v1677 = vpack.c.bf16 %v1654, %v1654
        %v1678 = vpack.c.bf16 %v1656, %v1656
        %v1679 = vpack.c.bf16 %v1658, %v1658
        %v1680 = vpack.c.bf16 %v1660, %v1660
        %v1682 = vsel %vm1452, %v1677, 0
        %vm1684 = vcmask 1043456
        %v1686 = vsel %vm1684, %v1442, 0
        %1688 = vmatprep.subr.bf16.mxu0 0
        %1689 = vmatpush1.bf16.msra.mxu0 %v1686
        %1690 = vmatprep.subr.bf16.mxu0 0
        %1691 = vmatpush1.bf16.msra.mxu0 0
        %1692 = vmatprep.subr.bf16.mxu0 0
        %1693 = vmatpush1.bf16.msra.mxu0 0
        %1694 = vmatprep.subr.bf16.mxu0 0
        %1695 = vmatpush1.bf16.msra.mxu0 0
        %1696 = vmatprep.subr.bf16.mxu0 0
        %1697 = vmatpush1.bf16.msra.mxu0 0
        %1698 = vmatprep.subr.bf16.mxu0 0
        %1699 = vmatpush1.bf16.msra.mxu0 0
        %1700 = vmatprep.subr.bf16.mxu0 0
        %1701 = vmatpush1.bf16.msra.mxu0 0
        %1702 = vmatprep.subr.bf16.mxu0 0
        %1703 = vmatpush1.bf16.msra.mxu0 0
        %1704 = vmatprep.subr.bf16.mxu0 0
        %1705 = vmatpush1.bf16.msra.mxu0 0
        %1706 = vmatprep.subr.bf16.mxu0 0
        %1707 = vmatpush1.bf16.msra.mxu0 0
        %1708 = vmatprep.subr.bf16.mxu0 0
        %1709 = vmatpush1.bf16.msra.mxu0 0
        %1710 = vmatprep.subr.bf16.mxu0 0
        %1711 = vmatpush1.bf16.msra.mxu0 0
        %1712 = vmatprep.subr.bf16.mxu0 0
        %1713 = vmatpush1.bf16.msra.mxu0 0
        %1714 = vmatprep.subr.bf16.mxu0 0
        %1715 = vmatpush1.bf16.msra.mxu0 0
        %1716 = vmatprep.subr.bf16.mxu0 0
        %1717 = vmatpush1.bf16.msra.mxu0 0
        %1718 = vmatprep.subr.bf16.mxu0 0
        %1719 = vmatpush1.bf16.msra.mxu0 0
        %1720 = vmatprep.mubr.bf16.mxu0 0
        %1721 = vmatmul.mubr.bf16.gmra.mrb[0].mxu0 %v1682
        %v1722 = vpop.f32.mrb[0].mxu0
        %v1723 = vadd.f32 0.0, %v1722
        %v1724 = vpop.f32.mrb[0].mxu0
        %v1725 = vpop.f32.mrb[0].mxu0
        %v1726 = vpop.f32.mrb[0].mxu0
        %1727 = vdwg.mxu0
        %v1729 = vsel %vm1452, %v1678, 0
        %v1732 = vsel %vm1684, %v1443, 0
        %1734 = vmatprep.subr.bf16.mxu0 0
        %1735 = vmatpush1.bf16.msra.mxu0 %v1732
        %1736 = vmatprep.subr.bf16.mxu0 0
        %1737 = vmatpush1.bf16.msra.mxu0 0
        %1738 = vmatprep.subr.bf16.mxu0 0
        %1739 = vmatpush1.bf16.msra.mxu0 0
        %1740 = vmatprep.subr.bf16.mxu0 0
        %1741 = vmatpush1.bf16.msra.mxu0 0
        %1742 = vmatprep.subr.bf16.mxu0 0
        %1743 = vmatpush1.bf16.msra.mxu0 0
        %1744 = vmatprep.subr.bf16.mxu0 0
        %1745 = vmatpush1.bf16.msra.mxu0 0
        %1746 = vmatprep.subr.bf16.mxu0 0
        %1747 = vmatpush1.bf16.msra.mxu0 0
        %1748 = vmatprep.subr.bf16.mxu0 0
        %1749 = vmatpush1.bf16.msra.mxu0 0
        %1750 = vmatprep.subr.bf16.mxu0 0
        %1751 = vmatpush1.bf16.msra.mxu0 0
        %1752 = vmatprep.subr.bf16.mxu0 0
        %1753 = vmatpush1.bf16.msra.mxu0 0
        %1754 = vmatprep.subr.bf16.mxu0 0
        %1755 = vmatpush1.bf16.msra.mxu0 0
        %1756 = vmatprep.subr.bf16.mxu0 0
        %1757 = vmatpush1.bf16.msra.mxu0 0
        %1758 = vmatprep.subr.bf16.mxu0 0
        %1759 = vmatpush1.bf16.msra.mxu0 0
        %1760 = vmatprep.subr.bf16.mxu0 0
        %1761 = vmatpush1.bf16.msra.mxu0 0
        %1762 = vmatprep.subr.bf16.mxu0 0
        %1763 = vmatpush1.bf16.msra.mxu0 0
        %1764 = vmatprep.subr.bf16.mxu0 0
        %1765 = vmatpush1.bf16.msra.mxu0 0
        %1766 = vmatprep.mubr.bf16.mxu0 0
        %1767 = vmatmul.mubr.bf16.gmra.mrb[0].mxu0 %v1729
        %v1768 = vpop.f32.mrb[0].mxu0
        %v1769 = vadd.f32 0.0, %v1768
        %v1770 = vpop.f32.mrb[0].mxu0
        %v1771 = vpop.f32.mrb[0].mxu0
        %v1772 = vpop.f32.mrb[0].mxu0
        %1773 = vdwg.mxu0
        %v1775 = vsel %vm1452, %v1679, 0
        %v1778 = vsel %vm1684, %v1444, 0
        %1780 = vmatprep.subr.bf16.mxu0 0
        %1781 = vmatpush1.bf16.msra.mxu0 %v1778
        %1782 = vmatprep.subr.bf16.mxu0 0
        %1783 = vmatpush1.bf16.msra.mxu0 0
        %1784 = vmatprep.subr.bf16.mxu0 0
        %1785 = vmatpush1.bf16.msra.mxu0 0
        %1786 = vmatprep.subr.bf16.mxu0 0
        %1787 = vmatpush1.bf16.msra.mxu0 0
        %1788 = vmatprep.subr.bf16.mxu0 0
        %1789 = vmatpush1.bf16.msra.mxu0 0
        %1790 = vmatprep.subr.bf16.mxu0 0
        %1791 = vmatpush1.bf16.msra.mxu0 0
        %1792 = vmatprep.subr.bf16.mxu0 0
        %1793 = vmatpush1.bf16.msra.mxu0 0
        %1794 = vmatprep.subr.bf16.mxu0 0
        %1795 = vmatpush1.bf16.msra.mxu0 0
        %1796 = vmatprep.subr.bf16.mxu0 0
        %1797 = vmatpush1.bf16.msra.mxu0 0
        %1798 = vmatprep.subr.bf16.mxu0 0
        %1799 = vmatpush1.bf16.msra.mxu0 0
        %1800 = vmatprep.subr.bf16.mxu0 0
        %1801 = vmatpush1.bf16.msra.mxu0 0
        %1802 = vmatprep.subr.bf16.mxu0 0
        %1803 = vmatpush1.bf16.msra.mxu0 0
        %1804 = vmatprep.subr.bf16.mxu0 0
        %1805 = vmatpush1.bf16.msra.mxu0 0
        %1806 = vmatprep.subr.bf16.mxu0 0
        %1807 = vmatpush1.bf16.msra.mxu0 0
        %1808 = vmatprep.subr.bf16.mxu0 0
        %1809 = vmatpush1.bf16.msra.mxu0 0
        %1810 = vmatprep.subr.bf16.mxu0 0
        %1811 = vmatpush1.bf16.msra.mxu0 0
        %1812 = vmatprep.mubr.bf16.mxu0 0
        %1813 = vmatmul.mubr.bf16.gmra.mrb[0].mxu0 %v1775
        %v1814 = vpop.f32.mrb[0].mxu0
        %v1815 = vadd.f32 0.0, %v1814
        %v1816 = vpop.f32.mrb[0].mxu0
        %v1817 = vpop.f32.mrb[0].mxu0
        %v1818 = vpop.f32.mrb[0].mxu0
        %1819 = vdwg.mxu0
        %v1821 = vsel %vm1452, %v1680, 0
        %v1824 = vsel %vm1684, %v1445, 0
        %1826 = vmatprep.subr.bf16.mxu0 0
        %1827 = vmatpush1.bf16.msra.mxu0 %v1824
        %1828 = vmatprep.subr.bf16.mxu0 0
        %1829 = vmatpush1.bf16.msra.mxu0 0
        %1830 = vmatprep.subr.bf16.mxu0 0
        %1831 = vmatpush1.bf16.msra.mxu0 0
        %1832 = vmatprep.subr.bf16.mxu0 0
        %1833 = vmatpush1.bf16.msra.mxu0 0
        %1834 = vmatprep.subr.bf16.mxu0 0
        %1835 = vmatpush1.bf16.msra.mxu0 0
        %1836 = vmatprep.subr.bf16.mxu0 0
        %1837 = vmatpush1.bf16.msra.mxu0 0
        %1838 = vmatprep.subr.bf16.mxu0 0
        %1839 = vmatpush1.bf16.msra.mxu0 0
        %1840 = vmatprep.subr.bf16.mxu0 0
        %1841 = vmatpush1.bf16.msra.mxu0 0
        %1842 = vmatprep.subr.bf16.mxu0 0
        %1843 = vmatpush1.bf16.msra.mxu0 0
        %1844 = vmatprep.subr.bf16.mxu0 0
        %1845 = vmatpush1.bf16.msra.mxu0 0
        %1846 = vmatprep.subr.bf16.mxu0 0
        %1847 = vmatpush1.bf16.msra.mxu0 0
        %1848 = vmatprep.subr.bf16.mxu0 0
        %1849 = vmatpush1.bf16.msra.mxu0 0
        %1850 = vmatprep.subr.bf16.mxu0 0
        %1851 = vmatpush1.bf16.msra.mxu0 0
        %1852 = vmatprep.subr.bf16.mxu0 0
        %1853 = vmatpush1.bf16.msra.mxu0 0
        %1854 = vmatprep.subr.bf16.mxu0 0
        %1855 = vmatpush1.bf16.msra.mxu0 0
        %1856 = vmatprep.subr.bf16.mxu0 0
        %1857 = vmatpush1.bf16.msra.mxu0 0
        %1858 = vmatprep.mubr.bf16.mxu0 0
        %1859 = vmatmul.mubr.bf16.gmra.mrb[0].mxu0 %v1821
        %v1860 = vpop.f32.mrb[0].mxu0
        %v1861 = vadd.f32 0.0, %v1860
        %v1862 = vpop.f32.mrb[0].mxu0
        %v1863 = vpop.f32.mrb[0].mxu0
        %v1864 = vpop.f32.mrb[0].mxu0
        %1865 = vdwg.mxu0
        %v1866 = vmul.f32 %v1723, %v1673
        %v1867 = vmul.f32 %v1769, %v1674
        %v1868 = vmul.f32 %v1815, %v1675
        %v1869 = vmul.f32 %v1861, %v1676
        %v1870 = vcombine.low %v1866, %v1868
        %v1871 = vcombine.high %v1866, %v1868
        %v1873 = vunpack.c.l.s4 1983009808
        %v1874 = vunpack.c.0.s8 %v1873
        %v1875 = vlaneseq
        %v1876 = vshrl.u32 %v1875, 7
        %v1877 = vsub.s32 %v1874, %v1876
        %v1878 = vrot.slane %v1870, %v1877
        %v1880 = vunpack.c.l.s4 1983009808
        %v1881 = vunpack.c.0.s8 %v1880
        %v1882 = vlaneseq
        %v1883 = vshrl.u32 %v1882, 7
        %v1884 = vsub.s32 %v1881, %v1883
        %v1885 = vrot.slane %v1871, %v1884
        %v1886 = vcombine.low %v1867, %v1869
        %v1887 = vcombine.high %v1867, %v1869
        %v1889 = vunpack.c.l.s4 1983009808
        %v1890 = vunpack.c.0.s8 %v1889
        %v1891 = vlaneseq
        %v1892 = vshrl.u32 %v1891, 7
        %v1893 = vsub.s32 %v1890, %v1892
        %v1894 = vrot.slane %v1886, %v1893
        %v1896 = vunpack.c.l.s4 1983009808
        %v1897 = vunpack.c.0.s8 %v1896
        %v1898 = vlaneseq
        %v1899 = vshrl.u32 %v1898, 7
        %v1900 = vsub.s32 %v1897, %v1899
        %v1901 = vrot.slane %v1887, %v1900
        %v1902 = vcombine.low %v1878, %v1894
        %v1903 = vcombine.high %v1878, %v1894
        %v1905 = vunpack.c.l.s4 1934713408
        %v1906 = vunpack.c.0.s8 %v1905
        %v1907 = vlaneseq
        %v1908 = vshrl.u32 %v1907, 7
        %v1909 = vsub.s32 %v1906, %v1908
        %v1910 = vrot.slane %v1902, %v1909
        %v1912 = vunpack.c.l.s4 1934713408
        %v1913 = vunpack.c.0.s8 %v1912
        %v1914 = vlaneseq
        %v1915 = vshrl.u32 %v1914, 7
        %v1916 = vsub.s32 %v1913, %v1915
        %v1917 = vrot.slane %v1903, %v1916
        %v1918 = vcombine.low %v1885, %v1901
        %v1919 = vcombine.high %v1885, %v1901
        %v1921 = vunpack.c.l.s4 1934713408
        %v1922 = vunpack.c.0.s8 %v1921
        %v1923 = vlaneseq
        %v1924 = vshrl.u32 %v1923, 7
        %v1925 = vsub.s32 %v1922, %v1924
        %v1926 = vrot.slane %v1918, %v1925
        %v1928 = vunpack.c.l.s4 1934713408
        %v1929 = vunpack.c.0.s8 %v1928
        %v1930 = vlaneseq
        %v1931 = vshrl.u32 %v1930, 7
        %v1932 = vsub.s32 %v1929, %v1931
        %v1933 = vrot.slane %v1919, %v1932
        %v1934 = vcombine.high %v1910, 0.0
        %v1935 = vcombine.high %v1917, 0.0
        %v1936 = vcombine.high %v1926, 0.0
        %v1937 = vcombine.high %v1933, 0.0
        %v1938 = vcombine.low %v1910, %v1917
        %v1940 = vunpack.c.l.s4 1983009808
        %v1941 = vunpack.c.0.s8 %v1940
        %v1942 = vlaneseq
        %v1943 = vshrl.u32 %v1942, 7
        %v1944 = vsub.s32 %v1941, %v1943
        %v1945 = vrot.slane %v1938, %v1944
        %v1946 = vcombine.low %v1934, %v1935
        %v1948 = vunpack.c.l.s4 1983009808
        %v1949 = vunpack.c.0.s8 %v1948
        %v1950 = vlaneseq
        %v1951 = vshrl.u32 %v1950, 7
        %v1952 = vsub.s32 %v1949, %v1951
        %v1953 = vrot.slane %v1946, %v1952
        %v1954 = vcombine.low %v1926, %v1933
        %v1956 = vunpack.c.l.s4 1983009808
        %v1957 = vunpack.c.0.s8 %v1956
        %v1958 = vlaneseq
        %v1959 = vshrl.u32 %v1958, 7
        %v1960 = vsub.s32 %v1957, %v1959
        %v1961 = vrot.slane %v1954, %v1960
        %v1962 = vcombine.low %v1936, %v1937
        %v1964 = vunpack.c.l.s4 1983009808
        %v1965 = vunpack.c.0.s8 %v1964
        %v1966 = vlaneseq
        %v1967 = vshrl.u32 %v1966, 7
        %v1968 = vsub.s32 %v1965, %v1967
        %v1969 = vrot.slane %v1962, %v1968
        %v1970 = vcombine.low %v1945, %v1953
        %v1971 = vcombine.high %v1945, %v1953
        %v1973 = vunpack.c.l.s4 1934713408
        %v1974 = vunpack.c.0.s8 %v1973
        %v1975 = vlaneseq
        %v1976 = vshrl.u32 %v1975, 7
        %v1977 = vsub.s32 %v1974, %v1976
        %v1978 = vrot.slane %v1970, %v1977
        %v1980 = vunpack.c.l.s4 1934713408
        %v1981 = vunpack.c.0.s8 %v1980
        %v1982 = vlaneseq
        %v1983 = vshrl.u32 %v1982, 7
        %v1984 = vsub.s32 %v1981, %v1983
        %v1985 = vrot.slane %v1971, %v1984
        %v1986 = vcombine.low %v1961, %v1969
        %v1987 = vcombine.high %v1961, %v1969
        %v1989 = vunpack.c.l.s4 1934713408
        %v1990 = vunpack.c.0.s8 %v1989
        %v1991 = vlaneseq
        %v1992 = vshrl.u32 %v1991, 7
        %v1993 = vsub.s32 %v1990, %v1992
        %v1994 = vrot.slane %v1986, %v1993
        %v1996 = vunpack.c.l.s4 1934713408
        %v1997 = vunpack.c.0.s8 %v1996
        %v1998 = vlaneseq
        %v1999 = vshrl.u32 %v1998, 7
        %v2000 = vsub.s32 %v1997, %v1999
        %v2001 = vrot.slane %v1987, %v2000
        %v2002 = vcombine.low %v1978, %v1994
        %v2003 = vcombine.high %v1978, %v1994
        %v2004 = vcombine.low %v1985, %v2001
        %v2005 = vcombine.high %v1985, %v2001
        %2007 = vrot.lane.b32.xlu0 %v2003, 8
        %v2008 = vpop.permute.xlu0 %2007
        %2011 = vrot.lane.b32.xlu0 %v2004, 16
        %v2012 = vpop.permute.xlu0 %2011
        %2015 = vrot.lane.b32.xlu0 %v2005, 24
        %v2016 = vpop.permute.xlu0 %2015
        %v2018 = vsel %vm1452, %v2002, %v2008
        %vm2019 = vcmask 130048
        %v2020 = vsel %vm2019, %v2018, %v2012
        %vm2021 = vcmask 195584
        %v2022 = vsel %vm2021, %v2020, %v2016
        %v2023 = vpack.c.bf16 %v2022, %v2022
        %v2024 = vld [vmem:[#allocation16] sm:$0xf]
        %v2025 = vld [vmem:[#allocation16 + $0x4] sm:$0xf]
        %v2026 = vld [vmem:[#allocation16 + $0x8] sm:$0xf]
        %v2027 = vld [vmem:[#allocation16 + $0xc] sm:$0xf]
        %v2028 = vld [vmem:[#allocation18] sm:$0x1]
        %v2030 = vlaneseq
        %v2031 = vshrl.u32 %v2030, 7
        %v2032 = vsub.s32 0, %v2031
        %v2033 = vrot.slane %v2028, %v2032
        %v2039 = vunpack.c.l.b16 %v2024
        %v2040 = vunpack.c.l.b16 %v2025
        %v2041 = vunpack.c.l.b16 %v2026
        %v2042 = vunpack.c.l.b16 %v2027
        %v2043 = vpack.c.b16 %v2040, %v2039
        %v2044 = vpack.c.b16 %v2042, %v2041
        %v2048 = vsel %vm1244, %v2023, 0
        %2050 = vmatprep.subr.bf16.mxu0 0
        %2051 = vmatpush1.bf16.msra.mxu0 %v2043
        %2052 = vmatprep.subr.bf16.mxu0 0
        %2053 = vmatpush1.bf16.msra.mxu0 %v2044
        %2054 = vmatprep.subr.bf16.mxu0 0
        %2055 = vmatpush1.bf16.msra.mxu0 0
        %2056 = vmatprep.subr.bf16.mxu0 0
        %2057 = vmatpush1.bf16.msra.mxu0 0
        %2058 = vmatprep.subr.bf16.mxu0 0
        %2059 = vmatpush1.bf16.msra.mxu0 0
        %2060 = vmatprep.subr.bf16.mxu0 0
        %2061 = vmatpush1.bf16.msra.mxu0 0
        %2062 = vmatprep.subr.bf16.mxu0 0
        %2063 = vmatpush1.bf16.msra.mxu0 0
        %2064 = vmatprep.subr.bf16.mxu0 0
        %2065 = vmatpush1.bf16.msra.mxu0 0
        %2066 = vmatprep.subr.bf16.mxu0 0
        %2067 = vmatpush1.bf16.msra.mxu0 0
        %2068 = vmatprep.subr.bf16.mxu0 0
        %2069 = vmatpush1.bf16.msra.mxu0 0
        %2070 = vmatprep.subr.bf16.mxu0 0
        %2071 = vmatpush1.bf16.msra.mxu0 0
        %2072 = vmatprep.subr.bf16.mxu0 0
        %2073 = vmatpush1.bf16.msra.mxu0 0
        %2074 = vmatprep.subr.bf16.mxu0 0
        %2075 = vmatpush1.bf16.msra.mxu0 0
        %2076 = vmatprep.subr.bf16.mxu0 0
        %2077 = vmatpush1.bf16.msra.mxu0 0
        %2078 = vmatprep.subr.bf16.mxu0 0
        %2079 = vmatpush1.bf16.msra.mxu0 0
        %2080 = vmatprep.subr.bf16.mxu0 0
        %2081 = vmatpush1.bf16.msra.mxu0 0
        %2082 = vmatprep.mubr.bf16.mxu0 0
        %2083 = vmatmul.mubr.bf16.gmra.mrb[0].mxu0 %v2048
        %v2084 = vpop.f32.mrb[0].mxu0
        %v2085 = vadd.f32 %v2033, %v2084
        %v2086 = vpop.f32.mrb[0].mxu0
        %v2087 = vpop.f32.mrb[0].mxu0
        %v2088 = vpop.f32.mrb[0].mxu0
        %2089 = vdwg.mxu0
        %v2090 = vadd.f32 %v1218, %v2085
        %v2091 = vld [vmem:[#allocation25] sm:$0x1]
        %v2092 = vld [vmem:[#allocation27] sm:$0x1]
        %v2093 = vsel %vm1244, %v2090, 0.0
        %2094 = vadd.xlane.f32.xlu0 %v2093
        %v2095 = vpop.xlane.xlu0 %2094
        %v2096 = vrcp.pop 32.0
        %v2097 = vmul.f32 %v2095, %v2096
        %v2098 = vsub.f32 %v2090, %v2097
        %v2099 = vmul.f32 %v2098, %v2098
        %v2100 = vsel %vm1244, %v2099, 0.0
        %2101 = vadd.xlane.f32.xlu0 %v2100
        %v2102 = vpop.xlane.xlu0 %2101
        %v2103 = vmul.f32 %v2102, %v2096
        %v2104 = vadd.f32 %v2103, 1e-05
        %v2105 = vrsqrt.pop %v2104
        %v2106 = vmul.f32 %v2098, %v2105
        %v2108 = vlaneseq
        %v2109 = vshrl.u32 %v2108, 7
        %v2110 = vsub.s32 0, %v2109
        %v2111 = vrot.slane %v2091, %v2110
        %v2113 = vmul.f32 %v2106, %v2111
        %v2115 = vlaneseq
        %v2116 = vshrl.u32 %v2115, 7
        %v2117 = vsub.s32 0, %v2116
        %v2118 = vrot.slane %v2092, %v2117
        %v2120 = vadd.f32 %v2113, %v2118
        %v2121 = vpack.c.bf16 %v2120, %v2120
        %v2122 = vld [vmem:[#allocation19] sm:$0xf]
        %v2123 = vld [vmem:[#allocation19 + $0x4] sm:$0xf]
        %v2124 = vld [vmem:[#allocation19 + $0x8] sm:$0xf]
        %v2125 = vld [vmem:[#allocation19 + $0xc] sm:$0xf]
        %v2126 = vld [vmem:[#allocation21] sm:$0x1]
        %v2128 = vlaneseq
        %v2129 = vshrl.u32 %v2128, 7
        %v2130 = vsub.s32 0, %v2129
        %v2131 = vrot.slane %v2126, %v2130
        %v2137 = vunpack.c.l.b16 %v2122
        %v2138 = vunpack.c.l.b16 %v2123
        %v2139 = vunpack.c.l.b16 %v2124
        %v2140 = vunpack.c.l.b16 %v2125
        %v2141 = vpack.c.b16 %v2138, %v2137
        %v2142 = vpack.c.b16 %v2140, %v2139
        %v2146 = vsel %vm1244, %v2121, 0
        %2148 = vmatprep.subr.bf16.mxu0 0
        %2149 = vmatpush1.bf16.msra.mxu0 %v2141
        %2150 = vmatprep.subr.bf16.mxu0 0
        %2151 = vmatpush1.bf16.msra.mxu0 %v2142
        %2152 = vmatprep.subr.bf16.mxu0 0
        %2153 = vmatpush1.bf16.msra.mxu0 0
        %2154 = vmatprep.subr.bf16.mxu0 0
        %2155 = vmatpush1.bf16.msra.mxu0 0
        %2156 = vmatprep.subr.bf16.mxu0 0
        %2157 = vmatpush1.bf16.msra.mxu0 0
        %2158 = vmatprep.subr.bf16.mxu0 0
        %2159 = vmatpush1.bf16.msra.mxu0 0
        %2160 = vmatprep.subr.bf16.mxu0 0
        %2161 = vmatpush1.bf16.msra.mxu0 0
        %2162 = vmatprep.subr.bf16.mxu0 0
        %2163 = vmatpush1.bf16.msra.mxu0 0
        %2164 = vmatprep.subr.bf16.mxu0 0
        %2165 = vmatpush1.bf16.msra.mxu0 0
        %2166 = vmatprep.subr.bf16.mxu0 0
        %2167 = vmatpush1.bf16.msra.mxu0 0
        %2168 = vmatprep.subr.bf16.mxu0 0
        %2169 = vmatpush1.bf16.msra.mxu0 0
        %2170 = vmatprep.subr.bf16.mxu0 0
        %2171 = vmatpush1.bf16.msra.mxu0 0
        %2172 = vmatprep.subr.bf16.mxu0 0
        %2173 = vmatpush1.bf16.msra.mxu0 0
        %2174 = vmatprep.subr.bf16.mxu0 0
        %2175 = vmatpush1.bf16.msra.mxu0 0
        %2176 = vmatprep.subr.bf16.mxu0 0
        %2177 = vmatpush1.bf16.msra.mxu0 0
        %2178 = vmatprep.subr.bf16.mxu0 0
        %2179 = vmatpush1.bf16.msra.mxu0 0
        %2180 = vmatprep.mubr.bf16.mxu0 0
        %2181 = vmatmul.mubr.bf16.gmra.mrb[0].mxu0 %v2146
        %v2182 = vpop.f32.mrb[0].mxu0
        %v2183 = vadd.f32 %v2131, %v2182
        %v2184 = vpop.f32.mrb[0].mxu0
        %v2185 = vpop.f32.mrb[0].mxu0
        %v2186 = vpop.f32.mrb[0].mxu0
        %2187 = vdwg.mxu0
        %v2188 = vmax.f32 %v2183, 0.0
        %v2189 = vpack.c.bf16 %v2188, %v2188
        %v2190 = vld [vmem:[#allocation22] sm:$0xf]
        %v2191 = vld [vmem:[#allocation22 + $0x4] sm:$0xf]
        %v2192 = vld [vmem:[#allocation22 + $0x8] sm:$0xf]
        %v2193 = vld [vmem:[#allocation22 + $0xc] sm:$0xf]
        %v2194 = vld [vmem:[#allocation22 + $0x10] sm:$0xf]
        %v2195 = vld [vmem:[#allocation22 + $0x14] sm:$0xf]
        %v2196 = vld [vmem:[#allocation22 + $0x18] sm:$0xf]
        %v2197 = vld [vmem:[#allocation22 + $0x1c] sm:$0xf]
        %v2198 = vld [vmem:[#allocation24] sm:$0x1]
        %v2200 = vlaneseq
        %v2201 = vshrl.u32 %v2200, 7
        %v2202 = vsub.s32 0, %v2201
        %v2203 = vrot.slane %v2198, %v2202
        %v2213 = vunpack.c.l.b16 %v2190
        %v2214 = vunpack.c.l.b16 %v2191
        %v2215 = vunpack.c.l.b16 %v2192
        %v2216 = vunpack.c.l.b16 %v2193
        %v2217 = vunpack.c.l.b16 %v2194
        %v2218 = vunpack.c.l.b16 %v2195
        %v2219 = vunpack.c.l.b16 %v2196
        %v2220 = vunpack.c.l.b16 %v2197
        %v2221 = vpack.c.b16 %v2214, %v2213
        %v2222 = vpack.c.b16 %v2216, %v2215
        %v2223 = vpack.c.b16 %v2218, %v2217
        %v2224 = vpack.c.b16 %v2220, %v2219
        %vm2229 = vcmask 523264
        %v2231 = vsel %vm2229, %v2189, 0
        %2233 = vmatprep.subr.bf16.mxu0 0
        %2234 = vmatpush1.bf16.msra.mxu0 %v2221
        %2235 = vmatprep.subr.bf16.mxu0 0
        %2236 = vmatpush1.bf16.msra.mxu0 %v2222
        %2237 = vmatprep.subr.bf16.mxu0 0
        %2238 = vmatpush1.bf16.msra.mxu0 %v2223
        %2239 = vmatprep.subr.bf16.mxu0 0
        %2240 = vmatpush1.bf16.msra.mxu0 %v2224
        %2241 = vmatprep.subr.bf16.mxu0 0
        %2242 = vmatpush1.bf16.msra.mxu0 0
        %2243 = vmatprep.subr.bf16.mxu0 0
        %2244 = vmatpush1.bf16.msra.mxu0 0
        %2245 = vmatprep.subr.bf16.mxu0 0
        %2246 = vmatpush1.bf16.msra.mxu0 0
        %2247 = vmatprep.subr.bf16.mxu0 0
        %2248 = vmatpush1.bf16.msra.mxu0 0
        %2249 = vmatprep.subr.bf16.mxu0 0
        %2250 = vmatpush1.bf16.msra.mxu0 0
        %2251 = vmatprep.subr.bf16.mxu0 0
        %2252 = vmatpush1.bf16.msra.mxu0 0
        %2253 = vmatprep.subr.bf16.mxu0 0
        %2254 = vmatpush1.bf16.msra.mxu0 0
        %2255 = vmatprep.subr.bf16.mxu0 0
        %2256 = vmatpush1.bf16.msra.mxu0 0
        %2257 = vmatprep.subr.bf16.mxu0 0
        %2258 = vmatpush1.bf16.msra.mxu0 0
        %2259 = vmatprep.subr.bf16.mxu0 0
        %2260 = vmatpush1.bf16.msra.mxu0 0
        %2261 = vmatprep.subr.bf16.mxu0 0
        %2262 = vmatpush1.bf16.msra.mxu0 0
        %2263 = vmatprep.subr.bf16.mxu0 0
        %2264 = vmatpush1.bf16.msra.mxu0 0
        %2265 = vmatprep.mubr.bf16.mxu0 0
        %2266 = vmatmul.mubr.bf16.gmra.mrb[0].mxu0 %v2231
        %v2267 = vpop.f32.mrb[0].mxu0
        %v2268 = vadd.f32 %v2203, %v2267
        %v2269 = vpop.f32.mrb[0].mxu0
        %v2270 = vpop.f32.mrb[0].mxu0
        %v2271 = vpop.f32.mrb[0].mxu0
        %2272 = vdwg.mxu0
        %v2273 = vadd.f32 %v2120, %v2268
        %v2274 = vld [vmem:[#allocation28] sm:$0x1]
        %v2275 = vld [vmem:[#allocation30] sm:$0x1]
        %v2276 = vsel %vm1244, %v2273, 0.0
        %2277 = vadd.xlane.f32.xlu0 %v2276
        %v2278 = vpop.xlane.xlu0 %2277
        %v2279 = vmul.f32 %v2278, %v2096
        %v2280 = vsub.f32 %v2273, %v2279
        %v2281 = vmul.f32 %v2280, %v2280
        %v2282 = vsel %vm1244, %v2281, 0.0
        %2283 = vadd.xlane.f32.xlu0 %v2282
        %v2284 = vpop.xlane.xlu0 %2283
        %v2285 = vmul.f32 %v2284, %v2096
        %v2286 = vadd.f32 %v2285, 1e-05
        %v2287 = vrsqrt.pop %v2286
        %v2288 = vmul.f32 %v2280, %v2287
        %v2290 = vlaneseq
        %v2291 = vshrl.u32 %v2290, 7
        %v2292 = vsub.s32 0, %v2291
        %v2293 = vrot.slane %v2274, %v2292
        %v2295 = vmul.f32 %v2288, %v2293
        %v2297 = vlaneseq
        %v2298 = vshrl.u32 %v2297, 7
        %v2299 = vsub.s32 0, %v2298
        %v2300 = vrot.slane %v2275, %v2299
        %v2302 = vadd.f32 %v2295, %v2300
        %2303 = vst.msk [vmem:[%s833] sm:$0xff] %vm1244, %v2302
        %s2304 = sand.u32 %s440, 1
        %s2305 = scalar_lea.sflag [#allocation6], %s2304
        %s2306 = sand.u32 %s440, 1
        %s2307 = smul.addr %s2306, 8
        %s2308 = scalar_lea.vmem [#allocation31], %s2307
        // Predicated region
        $region161: #{tpu_custom_call.1} parent=87 // pred_check
          %p2309 = pneg %p450
        $region162: #{tpu_custom_call.1} parent=87 // pred_check_branch
          %2311 = sbr.rel (%p2309) target = $region164
        $region163: #{tpu_custom_call.1} parent=87 // pred_region
          %s2313 = ssub.s32 128, 128
          %2314 = vsyncadd %s2305, %s2313
          %s2315 = sadd.s32 %s49, %s48
          %s2316 = smul.addr %s2315, 128
          %s2317 = scalar_lea.hbm %s17, %s2316
          %s2319 = sshll.u32 %s2308, 4
          %s2320 = int_to_ptr.vmem [resolvable:$true] %s2319
          %2322 = dma.vmem_to_hbm [thread:$0]  %s2320, 128, %s2317, %s2305
        $region164: #{tpu_custom_call.1} parent=87 // pred_fallthru
          _
      $region88: #{tpu_custom_call.1} parent=5 // pred_fallthru
        _
      %p2323 = scmp.le.s32.totalorder 2, %s39
      // Predicated region
      $region165: #{tpu_custom_call.1} parent=5 // pred_check
        %p2324 = pneg %p2323
      $region166: #{tpu_custom_call.1} parent=5 // pred_check_branch
        %2326 = sbr.rel (%p2324) target = $region168
      $region167: #{tpu_custom_call.1} parent=5 // pred_region
        %s2327 = ssub.s32 %s39, 2
        // Predicated region
        $region169: #{tpu_custom_call.1} parent=167 // pred_check
          %p2328 = pneg %p456
        $region170: #{tpu_custom_call.1} parent=167 // pred_check_branch
          %2330 = sbr.rel (%p2328) target = $region172
        $region171: #{tpu_custom_call.1} parent=167 // pred_region
          %s2331 = sand.u32 %s441, 1
          %s2332 = scalar_lea.sflag [#allocation6], %s2331
          %s2333 = sand.u32 %s441, 1
          %s2334 = smul.addr %s2333, 8
          %s2335 = scalar_lea.vmem [#allocation31], %s2334
          %2336 = dma.done %s2332, 128
        $region172: #{tpu_custom_call.1} parent=167 // pred_fallthru
          _
      $region168: #{tpu_custom_call.1} parent=5 // pred_fallthru
        _
    $region6: #{tpu_custom_call.1} parent=1 // loop_footer
      %s43 = sadd.s32 1, %s39
    $region7: #{tpu_custom_call.1} parent=1 // loop_footer_branch
      %38 = sbr.rel target = $region3
    $region8: #{tpu_custom_call.1} parent=1 // loop_exit
      _
    %2337 = vsyncpa [#allocation5], 1
    %s2338 = scalar_lea.sflag [#allocation5], 1
    %2339 = vsyncpa %s2338, 1
    %2340 = vsyncpa [#allocation8], 1
    %s2341 = scalar_lea.sflag [#allocation8], 1
    %2342 = vsyncpa %s2341, 1
    %2343 = vsyncpa [#allocation11], 1
    %2344 = vsyncpa [#allocation14], 1
    %2345 = vsyncpa [#allocation17], 1
    %2346 = vsyncpa [#allocation20], 1
    %2347 = vsyncpa [#allocation23], 1
    %2348 = vsyncpa [#allocation26], 1
    %2349 = vsyncpa [#allocation29], 1
    %2350 = vsyncpa [#allocation6], 1
    %s2351 = scalar_lea.sflag [#allocation6], 1
    %2352 = vsyncpa %s2351, 1

</llo_original>
